<compile_context>
chip_gen: v5e
topology: v5e:2x2
jax: 0.10.0
libtpu: 0.0.40
codegen_flags: <defaults>
</compile_context>

<pallas_src>
import math

import jax
import jax.numpy as jnp
from jax.experimental import pallas as pl
from jax.experimental.pallas import tpu as pltpu

WINDOW_SIZE = 11          # same default as the PyTorch SSIM module
SIGMA = 1.5
PAD = WINDOW_SIZE // 2
C1 = 0.01 ** 2            # assumes inputs in [0, 1] (pytorch-ssim default)
C2 = 0.03 ** 2
_LANES = 128              # lane-dense output tile width
_K_MAX = 8                # max planes per grid step
_VMEM_BUDGET = 8 << 20    # conservative per-step input budget (fits v5e/v6e/v7x)


def _gaussian_1d(window_size, sigma):
    g = [math.exp(-((x - window_size // 2) ** 2) / (2.0 * sigma ** 2))
         for x in range(window_size)]
    s = sum(g)
    return [v / s for v in g]


# Identical to gaussian(11, 1.5) in the reference; the 2D window is outer(g, g).
_GAUSS = _gaussian_1d(WINDOW_SIZE, SIGMA)


def _band_matrix(n):
    """(n, n) banded matrix B with B[a, b] = g[b - a + PAD] for |a - b| <= PAD.

    Gv = _band_matrix(H) applies the zero-padded vertical Gaussian pass as a
    left matmul; _band_matrix(W).T applies the horizontal pass as a right
    matmul (the two coincide because the Gaussian taps are symmetric).
    """
    g = jnp.asarray(_GAUSS, dtype=jnp.float32)
    a = jnp.arange(n)[:, None]
    b = jnp.arange(n)[None, :]
    d = b - a + PAD
    valid = (d >= 0) & (d < WINDOW_SIZE)
    return jnp.where(valid, g[jnp.clip(d, 0, WINDOW_SIZE - 1)], 0.0)


def _choose_k(num_planes, h, w):
    """Planes per grid step: VMEM-bounded, divides num_planes, grid >= 2."""
    per_plane = 2 * 2 * h * w * 4            # two inputs, double-buffered, f32
    k_cap = int(min(_K_MAX, max(1, _VMEM_BUDGET // per_plane), num_planes))
    best = 1
    for k in range(1, k_cap + 1):
        if num_planes % k == 0 and (num_planes // k >= 2 or num_planes < 2):
            best = k
    return best


def _ssim_sums_kernel(x1_ref, x2_ref, gv_ref, gh_ref, out_ref):
    """Per-plane sums of the SSIM map for a block of K planes."""
    k_planes = x1_ref.shape[0]
    gv = gv_ref[...]          # (H, H)  vertical Gaussian pass
    gh = gh_ref[...]          # (W, W)  horizontal Gaussian pass

    def conv(p):              # Gv @ p @ Gh == F.conv2d(p, window, padding=PAD)
        h = jnp.dot(p, gh, preferred_element_type=jnp.float32)
        return jnp.dot(gv, h, preferred_element_type=jnp.float32)

    for k in range(k_planes):                       # unrolled; K is small
        x1 = x1_ref[k]                              # (H, W)
        x2 = x2_ref[k]

        mu1 = conv(x1)
        mu2 = conv(x2)
        s12 = conv(x1 * x2)
        ssq = conv(x1 * x1 + x2 * x2)               # conv(x1^2) + conv(x2^2)

        mu12 = mu1 * mu2
        musq = mu1 * mu1 + mu2 * mu2
        num = (2.0 * mu12 + C1) * (2.0 * (s12 - mu12) + C2)
        den = (musq + C1) * (ssq - musq + C2)
        plane_sum = jnp.sum(num * pl.reciprocal(den, approx=False))

        out_ref[0, k:k + 1, :] = jnp.full((1, _LANES), plane_sum,
                                          dtype=jnp.float32)


def _plane_sums(x1, x2):
    """Per-plane sums of the SSIM map.  x1, x2: (P, H, W) float32."""
    p, h, w = x1.shape
    k = _choose_k(p, h, w)
    grid = p // k
    gv = _band_matrix(h)        # (H, H)
    gh = _band_matrix(w).T      # (W, W)

    out = pl.pallas_call(
        _ssim_sums_kernel,
        out_shape=jax.ShapeDtypeStruct((grid, k, _LANES), jnp.float32),
        grid_spec=pltpu.PrefetchScalarGridSpec(
            num_scalar_prefetch=0,
            grid=(grid,),
            in_specs=[
                pl.BlockSpec((k, h, w), lambda i: (i, 0, 0)),
                pl.BlockSpec((k, h, w), lambda i: (i, 0, 0)),
                pl.BlockSpec((h, h), lambda i: (0, 0)),
                pl.BlockSpec((w, w), lambda i: (0, 0)),
            ],
            out_specs=pl.BlockSpec((1, k, _LANES), lambda i: (i, 0, 0)),
        ),
        compiler_params=pltpu.CompilerParams(
            dimension_semantics=("parallel",)),
    )(x1, x2, gv, gh)

    return out[:, :, 0].reshape(p)      # every lane carries the same sum


def ssim(img1, img2, size_average=True):
    """Matches SSIM(window_size=11, size_average=...).forward(img1, img2)."""
    b, c, h, w = img1.shape
    x1 = img1.astype(jnp.float32).reshape(b * c, h, w)
    x2 = img2.astype(jnp.float32).reshape(b * c, h, w)
    sums = _plane_sums(x1, x2)                       # (B*C,)
    if size_average:
        return sums.sum() / (b * c * h * w)          # == ssim_map.mean()
    # == ssim_map.mean(1).mean(1).mean(1): mean over (C, H, W) per batch
    return sums.reshape(b, c).sum(axis=1) / (c * h * w)


def _ssim_reference(img1, img2, size_average=True):
    """Pure-JAX/XLA reference mirroring the PyTorch _ssim (for validation)."""
    _, c, _, _ = img1.shape
    g = jnp.asarray(_GAUSS, dtype=jnp.float32)
    win = jnp.broadcast_to(jnp.outer(g, g), (c, 1, WINDOW_SIZE, WINDOW_SIZE))

    def conv(x):
        return jax.lax.conv_general_dilated(
            x, win, window_strides=(1, 1),
            padding=[(PAD, PAD), (PAD, PAD)],
            feature_group_count=c,
            dimension_numbers=("NCHW", "OIHW", "NCHW"))

    i1 = img1.astype(jnp.float32)
    i2 = img2.astype(jnp.float32)
    mu1, mu2 = conv(i1), conv(i2)
    mu1_sq, mu2_sq, mu1_mu2 = mu1 * mu1, mu2 * mu2, mu1 * mu2
    sigma1_sq = conv(i1 * i1) - mu1_sq
    sigma2_sq = conv(i2 * i2) - mu2_sq
    sigma12 = conv(i1 * i2) - mu1_mu2
    ssim_map = ((2 * mu1_mu2 + C1) * (2 * sigma12 + C2)
                / ((mu1_sq + mu2_sq + C1) * (sigma1_sq + sigma2_sq + C2)))
    if size_average:
        return ssim_map.mean()
    return ssim_map.mean(axis=(1, 2, 3))


if __name__ == "__main__":
    key = jax.random.PRNGKey(0)
    k1, k2 = jax.random.split(key)
    B, C, H, W = 2, 4, 16, 16
    img1 = jax.random.uniform(k1, (B, C, H, W), dtype=jnp.float32)
    img2 = jax.random.uniform(k2, (B, C, H, W), dtype=jnp.float32)

    out = jax.block_until_ready(ssim(img1, img2, size_average=True))
    out_per_batch = jax.block_until_ready(ssim(img1, img2, size_average=False))
    assert out.shape == () and out_per_batch.shape == (B,)

    ref = jax.block_until_ready(_ssim_reference(img1, img2, True))
    ref_per_batch = jax.block_until_ready(_ssim_reference(img1, img2, False))
    assert abs(float(out) - float(ref)) < 2e-4
    assert float(jnp.max(jnp.abs(out_per_batch - ref_per_batch))) < 2e-4

    print("KERNEL_OK")
</pallas_src>

<mosaic_0001>
module attributes {stable_mosaic.version = 11 : i64} {
  func.func @_ssim_sums_kernel(%arg0: i32, %arg1: memref<4x16x16xf32, #tpu.memory_space<vmem>>, %arg2: memref<4x16x16xf32, #tpu.memory_space<vmem>>, %arg3: memref<16x16xf32, #tpu.memory_space<vmem>>, %arg4: memref<16x16xf32, #tpu.memory_space<vmem>>, %arg5: memref<1x4x128xf32, #tpu.memory_space<vmem>>) attributes {dimension_semantics = [#tpu.dimension_semantics<parallel>], iteration_bounds = array<i64: 2>, scalar_prefetch = 0 : i64, scratch_operands = 0 : i64, tpu.core_type = #tpu.core_type<tc>, window_params = [{transform_indices = @transform_0, window_bounds = array<i64: 4, 16, 16>}, {transform_indices = @transform_1, window_bounds = array<i64: 4, 16, 16>}, {pipeline_mode = #tpu.pipeline_mode<synchronous>, transform_indices = @transform_2, window_bounds = array<i64: 16, 16>}, {pipeline_mode = #tpu.pipeline_mode<synchronous>, transform_indices = @transform_3, window_bounds = array<i64: 16, 16>}, {transform_indices = @transform_4, window_bounds = array<i64: 1, 4, 128>}]} {
    %c0 = arith.constant 0 : index
    %c0_0 = arith.constant 0 : index
    %0 = vector.load %arg3[%c0, %c0_0] : memref<16x16xf32, #tpu.memory_space<vmem>>, vector<16x16xf32>
    %c0_1 = arith.constant 0 : index
    %c0_2 = arith.constant 0 : index
    %1 = vector.load %arg4[%c0_1, %c0_2] : memref<16x16xf32, #tpu.memory_space<vmem>>, vector<16x16xf32>
    %c0_3 = arith.constant 0 : index
    %c0_4 = arith.constant 0 : index
    %c0_5 = arith.constant 0 : index
    %2 = vector.load %arg1[%c0_3, %c0_4, %c0_5] : memref<4x16x16xf32, #tpu.memory_space<vmem>>, vector<1x16x16xf32>
    %3 = vector.shape_cast %2 : vector<1x16x16xf32> to vector<16x16xf32>
    %c0_6 = arith.constant 0 : index
    %c0_7 = arith.constant 0 : index
    %c0_8 = arith.constant 0 : index
    %4 = vector.load %arg2[%c0_6, %c0_7, %c0_8] : memref<4x16x16xf32, #tpu.memory_space<vmem>>, vector<1x16x16xf32>
    %5 = vector.shape_cast %4 : vector<1x16x16xf32> to vector<16x16xf32>
    %cst = arith.constant dense<0.000000e+00> : vector<16x16xf32>
    %6 = tpu.matmul %3, %1, %cst {dimension_numbers = #tpu.dot_dimension_numbers<[1], [0], [0], [1], [0, 0, 1, 1], [], []>} : vector<16x16xf32>, vector<16x16xf32>, vector<16x16xf32> -> vector<16x16xf32>
    %cst_9 = arith.constant dense<0.000000e+00> : vector<16x16xf32>
    %7 = tpu.matmul %0, %6, %cst_9 {dimension_numbers = #tpu.dot_dimension_numbers<[1], [0], [0], [1], [0, 0, 1, 1], [], []>} : vector<16x16xf32>, vector<16x16xf32>, vector<16x16xf32> -> vector<16x16xf32>
    %cst_10 = arith.constant dense<0.000000e+00> : vector<16x16xf32>
    %8 = tpu.matmul %5, %1, %cst_10 {dimension_numbers = #tpu.dot_dimension_numbers<[1], [0], [0], [1], [0, 0, 1, 1], [], []>} : vector<16x16xf32>, vector<16x16xf32>, vector<16x16xf32> -> vector<16x16xf32>
    %cst_11 = arith.constant dense<0.000000e+00> : vector<16x16xf32>
    %9 = tpu.matmul %0, %8, %cst_11 {dimension_numbers = #tpu.dot_dimension_numbers<[1], [0], [0], [1], [0, 0, 1, 1], [], []>} : vector<16x16xf32>, vector<16x16xf32>, vector<16x16xf32> -> vector<16x16xf32>
    %10 = arith.mulf %3, %5 : vector<16x16xf32>
    %cst_12 = arith.constant dense<0.000000e+00> : vector<16x16xf32>
    %11 = tpu.matmul %10, %1, %cst_12 {dimension_numbers = #tpu.dot_dimension_numbers<[1], [0], [0], [1], [0, 0, 1, 1], [], []>} : vector<16x16xf32>, vector<16x16xf32>, vector<16x16xf32> -> vector<16x16xf32>
    %cst_13 = arith.constant dense<0.000000e+00> : vector<16x16xf32>
    %12 = tpu.matmul %0, %11, %cst_13 {dimension_numbers = #tpu.dot_dimension_numbers<[1], [0], [0], [1], [0, 0, 1, 1], [], []>} : vector<16x16xf32>, vector<16x16xf32>, vector<16x16xf32> -> vector<16x16xf32>
    %13 = arith.mulf %3, %3 : vector<16x16xf32>
    %14 = arith.mulf %5, %5 : vector<16x16xf32>
    %15 = arith.addf %13, %14 : vector<16x16xf32>
    %cst_14 = arith.constant dense<0.000000e+00> : vector<16x16xf32>
    %16 = tpu.matmul %15, %1, %cst_14 {dimension_numbers = #tpu.dot_dimension_numbers<[1], [0], [0], [1], [0, 0, 1, 1], [], []>} : vector<16x16xf32>, vector<16x16xf32>, vector<16x16xf32> -> vector<16x16xf32>
    %cst_15 = arith.constant dense<0.000000e+00> : vector<16x16xf32>
    %17 = tpu.matmul %0, %16, %cst_15 {dimension_numbers = #tpu.dot_dimension_numbers<[1], [0], [0], [1], [0, 0, 1, 1], [], []>} : vector<16x16xf32>, vector<16x16xf32>, vector<16x16xf32> -> vector<16x16xf32>
    %18 = arith.mulf %7, %9 : vector<16x16xf32>
    %19 = arith.mulf %7, %7 : vector<16x16xf32>
    %20 = arith.mulf %9, %9 : vector<16x16xf32>
    %21 = arith.addf %19, %20 : vector<16x16xf32>
    %cst_16 = arith.constant 2.000000e+00 : f32
    %22 = vector.broadcast %cst_16 : f32 to vector<16x16xf32>
    %23 = arith.mulf %22, %18 : vector<16x16xf32>
    %cst_17 = arith.constant 9.99999974E-5 : f32
    %24 = vector.broadcast %cst_17 : f32 to vector<16x16xf32>
    %25 = arith.addf %23, %24 : vector<16x16xf32>
    %26 = arith.subf %12, %18 : vector<16x16xf32>
    %cst_18 = arith.constant 2.000000e+00 : f32
    %27 = vector.broadcast %cst_18 : f32 to vector<16x16xf32>
    %28 = arith.mulf %27, %26 : vector<16x16xf32>
    %cst_19 = arith.constant 8.99999984E-4 : f32
    %29 = vector.broadcast %cst_19 : f32 to vector<16x16xf32>
    %30 = arith.addf %28, %29 : vector<16x16xf32>
    %31 = arith.mulf %25, %30 : vector<16x16xf32>
    %cst_20 = arith.constant 9.99999974E-5 : f32
    %32 = vector.broadcast %cst_20 : f32 to vector<16x16xf32>
    %33 = arith.addf %21, %32 : vector<16x16xf32>
    %34 = arith.subf %17, %21 : vector<16x16xf32>
    %cst_21 = arith.constant 8.99999984E-4 : f32
    %35 = vector.broadcast %cst_21 : f32 to vector<16x16xf32>
    %36 = arith.addf %34, %35 : vector<16x16xf32>
    %37 = arith.mulf %33, %36 : vector<16x16xf32>
    %38 = tpu.reciprocal %37 : vector<16x16xf32> -> vector<16x16xf32>
    %39 = arith.mulf %31, %38 : vector<16x16xf32>
    %40 = vector.shape_cast %39 : vector<16x16xf32> to vector<1x16x16xf32>
    %cst_22 = arith.constant dense<0.000000e+00> : vector<1xf32>
    %41 = vector.multi_reduction <add>, %40, %cst_22 [1, 2] : vector<1x16x16xf32> to vector<1xf32>
    %42 = vector.shape_cast %41 : vector<1xf32> to vector<1x1x1xf32>
    %43 = vector.extract %42[0, 0, 0] : f32 from vector<1x1x1xf32>
    %44 = vector.broadcast %43 : f32 to vector<1x128xf32>
    %c0_23 = arith.constant 0 : index
    %c0_24 = arith.constant 0 : index
    %c0_25 = arith.constant 0 : index
    %45 = vector.load %arg5[%c0_23, %c0_24, %c0_25] : memref<1x4x128xf32, #tpu.memory_space<vmem>>, vector<1x1x128xf32>
    %46 = vector.shape_cast %45 : vector<1x1x128xf32> to vector<1x128xf32>
    %47 = vector.shape_cast %44 : vector<1x128xf32> to vector<1x1x128xf32>
    tpu.vector_store %arg5[%c0_23, %c0_24, %c0_25], %47 {strides = array<i32>} : memref<1x4x128xf32, #tpu.memory_space<vmem>>, vector<1x1x128xf32>,
    %c1 = arith.constant 1 : index
    %c0_26 = arith.constant 0 : index
    %c0_27 = arith.constant 0 : index
    %48 = vector.load %arg1[%c1, %c0_26, %c0_27] : memref<4x16x16xf32, #tpu.memory_space<vmem>>, vector<1x16x16xf32>
    %49 = vector.shape_cast %48 : vector<1x16x16xf32> to vector<16x16xf32>
    %c1_28 = arith.constant 1 : index
    %c0_29 = arith.constant 0 : index
    %c0_30 = arith.constant 0 : index
    %50 = vector.load %arg2[%c1_28, %c0_29, %c0_30] : memref<4x16x16xf32, #tpu.memory_space<vmem>>, vector<1x16x16xf32>
    %51 = vector.shape_cast %50 : vector<1x16x16xf32> to vector<16x16xf32>
    %cst_31 = arith.constant dense<0.000000e+00> : vector<16x16xf32>
    %52 = tpu.matmul %49, %1, %cst_31 {dimension_numbers = #tpu.dot_dimension_numbers<[1], [0], [0], [1], [0, 0, 1, 1], [], []>} : vector<16x16xf32>, vector<16x16xf32>, vector<16x16xf32> -> vector<16x16xf32>
    %cst_32 = arith.constant dense<0.000000e+00> : vector<16x16xf32>
    %53 = tpu.matmul %0, %52, %cst_32 {dimension_numbers = #tpu.dot_dimension_numbers<[1], [0], [0], [1], [0, 0, 1, 1], [], []>} : vector<16x16xf32>, vector<16x16xf32>, vector<16x16xf32> -> vector<16x16xf32>
    %cst_33 = arith.constant dense<0.000000e+00> : vector<16x16xf32>
    %54 = tpu.matmul %51, %1, %cst_33 {dimension_numbers = #tpu.dot_dimension_numbers<[1], [0], [0], [1], [0, 0, 1, 1], [], []>} : vector<16x16xf32>, vector<16x16xf32>, vector<16x16xf32> -> vector<16x16xf32>
    %cst_34 = arith.constant dense<0.000000e+00> : vector<16x16xf32>
    %55 = tpu.matmul %0, %54, %cst_34 {dimension_numbers = #tpu.dot_dimension_numbers<[1], [0], [0], [1], [0, 0, 1, 1], [], []>} : vector<16x16xf32>, vector<16x16xf32>, vector<16x16xf32> -> vector<16x16xf32>
    %56 = arith.mulf %49, %51 : vector<16x16xf32>
    %cst_35 = arith.constant dense<0.000000e+00> : vector<16x16xf32>
    %57 = tpu.matmul %56, %1, %cst_35 {dimension_numbers = #tpu.dot_dimension_numbers<[1], [0], [0], [1], [0, 0, 1, 1], [], []>} : vector<16x16xf32>, vector<16x16xf32>, vector<16x16xf32> -> vector<16x16xf32>
    %cst_36 = arith.constant dense<0.000000e+00> : vector<16x16xf32>
    %58 = tpu.matmul %0, %57, %cst_36 {dimension_numbers = #tpu.dot_dimension_numbers<[1], [0], [0], [1], [0, 0, 1, 1], [], []>} : vector<16x16xf32>, vector<16x16xf32>, vector<16x16xf32> -> vector<16x16xf32>
    %59 = arith.mulf %49, %49 : vector<16x16xf32>
    %60 = arith.mulf %51, %51 : vector<16x16xf32>
    %61 = arith.addf %59, %60 : vector<16x16xf32>
    %cst_37 = arith.constant dense<0.000000e+00> : vector<16x16xf32>
    %62 = tpu.matmul %61, %1, %cst_37 {dimension_numbers = #tpu.dot_dimension_numbers<[1], [0], [0], [1], [0, 0, 1, 1], [], []>} : vector<16x16xf32>, vector<16x16xf32>, vector<16x16xf32> -> vector<16x16xf32>
    %cst_38 = arith.constant dense<0.000000e+00> : vector<16x16xf32>
    %63 = tpu.matmul %0, %62, %cst_38 {dimension_numbers = #tpu.dot_dimension_numbers<[1], [0], [0], [1], [0, 0, 1, 1], [], []>} : vector<16x16xf32>, vector<16x16xf32>, vector<16x16xf32> -> vector<16x16xf32>
    %64 = arith.mulf %53, %55 : vector<16x16xf32>
    %65 = arith.mulf %53, %53 : vector<16x16xf32>
    %66 = arith.mulf %55, %55 : vector<16x16xf32>
    %67 = arith.addf %65, %66 : vector<16x16xf32>
    %cst_39 = arith.constant 2.000000e+00 : f32
    %68 = vector.broadcast %cst_39 : f32 to vector<16x16xf32>
    %69 = arith.mulf %68, %64 : vector<16x16xf32>
    %cst_40 = arith.constant 9.99999974E-5 : f32
    %70 = vector.broadcast %cst_40 : f32 to vector<16x16xf32>
    %71 = arith.addf %69, %70 : vector<16x16xf32>
    %72 = arith.subf %58, %64 : vector<16x16xf32>
    %cst_41 = arith.constant 2.000000e+00 : f32
    %73 = vector.broadcast %cst_41 : f32 to vector<16x16xf32>
    %74 = arith.mulf %73, %72 : vector<16x16xf32>
    %cst_42 = arith.constant 8.99999984E-4 : f32
    %75 = vector.broadcast %cst_42 : f32 to vector<16x16xf32>
    %76 = arith.addf %74, %75 : vector<16x16xf32>
    %77 = arith.mulf %71, %76 : vector<16x16xf32>
    %cst_43 = arith.constant 9.99999974E-5 : f32
    %78 = vector.broadcast %cst_43 : f32 to vector<16x16xf32>
    %79 = arith.addf %67, %78 : vector<16x16xf32>
    %80 = arith.subf %63, %67 : vector<16x16xf32>
    %cst_44 = arith.constant 8.99999984E-4 : f32
    %81 = vector.broadcast %cst_44 : f32 to vector<16x16xf32>
    %82 = arith.addf %80, %81 : vector<16x16xf32>
    %83 = arith.mulf %79, %82 : vector<16x16xf32>
    %84 = tpu.reciprocal %83 : vector<16x16xf32> -> vector<16x16xf32>
    %85 = arith.mulf %77, %84 : vector<16x16xf32>
    %86 = vector.shape_cast %85 : vector<16x16xf32> to vector<1x16x16xf32>
    %cst_45 = arith.constant dense<0.000000e+00> : vector<1xf32>
    %87 = vector.multi_reduction <add>, %86, %cst_45 [1, 2] : vector<1x16x16xf32> to vector<1xf32>
    %88 = vector.shape_cast %87 : vector<1xf32> to vector<1x1x1xf32>
    %89 = vector.extract %88[0, 0, 0] : f32 from vector<1x1x1xf32>
    %90 = vector.broadcast %89 : f32 to vector<1x128xf32>
    %c0_46 = arith.constant 0 : index
    %c1_47 = arith.constant 1 : index
    %c0_48 = arith.constant 0 : index
    %91 = vector.load %arg5[%c0_46, %c1_47, %c0_48] : memref<1x4x128xf32, #tpu.memory_space<vmem>>, vector<1x1x128xf32>
    %92 = vector.shape_cast %91 : vector<1x1x128xf32> to vector<1x128xf32>
    %93 = vector.shape_cast %90 : vector<1x128xf32> to vector<1x1x128xf32>
    tpu.vector_store %arg5[%c0_46, %c1_47, %c0_48], %93 {strides = array<i32>} : memref<1x4x128xf32, #tpu.memory_space<vmem>>, vector<1x1x128xf32>,
    %c2 = arith.constant 2 : index
    %c0_49 = arith.constant 0 : index
    %c0_50 = arith.constant 0 : index
    %94 = vector.load %arg1[%c2, %c0_49, %c0_50] : memref<4x16x16xf32, #tpu.memory_space<vmem>>, vector<1x16x16xf32>
    %95 = vector.shape_cast %94 : vector<1x16x16xf32> to vector<16x16xf32>
    %c2_51 = arith.constant 2 : index
    %c0_52 = arith.constant 0 : index
    %c0_53 = arith.constant 0 : index
    %96 = vector.load %arg2[%c2_51, %c0_52, %c0_53] : memref<4x16x16xf32, #tpu.memory_space<vmem>>, vector<1x16x16xf32>
    %97 = vector.shape_cast %96 : vector<1x16x16xf32> to vector<16x16xf32>
    %cst_54 = arith.constant dense<0.000000e+00> : vector<16x16xf32>
    %98 = tpu.matmul %95, %1, %cst_54 {dimension_numbers = #tpu.dot_dimension_numbers<[1], [0], [0], [1], [0, 0, 1, 1], [], []>} : vector<16x16xf32>, vector<16x16xf32>, vector<16x16xf32> -> vector<16x16xf32>
    %cst_55 = arith.constant dense<0.000000e+00> : vector<16x16xf32>
    %99 = tpu.matmul %0, %98, %cst_55 {dimension_numbers = #tpu.dot_dimension_numbers<[1], [0], [0], [1], [0, 0, 1, 1], [], []>} : vector<16x16xf32>, vector<16x16xf32>, vector<16x16xf32> -> vector<16x16xf32>
    %cst_56 = arith.constant dense<0.000000e+00> : vector<16x16xf32>
    %100 = tpu.matmul %97, %1, %cst_56 {dimension_numbers = #tpu.dot_dimension_numbers<[1], [0], [0], [1], [0, 0, 1, 1], [], []>} : vector<16x16xf32>, vector<16x16xf32>, vector<16x16xf32> -> vector<16x16xf32>
    %cst_57 = arith.constant dense<0.000000e+00> : vector<16x16xf32>
    %101 = tpu.matmul %0, %100, %cst_57 {dimension_numbers = #tpu.dot_dimension_numbers<[1], [0], [0], [1], [0, 0, 1, 1], [], []>} : vector<16x16xf32>, vector<16x16xf32>, vector<16x16xf32> -> vector<16x16xf32>
    %102 = arith.mulf %95, %97 : vector<16x16xf32>
    %cst_58 = arith.constant dense<0.000000e+00> : vector<16x16xf32>
    %103 = tpu.matmul %102, %1, %cst_58 {dimension_numbers = #tpu.dot_dimension_numbers<[1], [0], [0], [1], [0, 0, 1, 1], [], []>} : vector<16x16xf32>, vector<16x16xf32>, vector<16x16xf32> -> vector<16x16xf32>
    %cst_59 = arith.constant dense<0.000000e+00> : vector<16x16xf32>
    %104 = tpu.matmul %0, %103, %cst_59 {dimension_numbers = #tpu.dot_dimension_numbers<[1], [0], [0], [1], [0, 0, 1, 1], [], []>} : vector<16x16xf32>, vector<16x16xf32>, vector<16x16xf32> -> vector<16x16xf32>
    %105 = arith.mulf %95, %95 : vector<16x16xf32>
    %106 = arith.mulf %97, %97 : vector<16x16xf32>
    %107 = arith.addf %105, %106 : vector<16x16xf32>
    %cst_60 = arith.constant dense<0.000000e+00> : vector<16x16xf32>
    %108 = tpu.matmul %107, %1, %cst_60 {dimension_numbers = #tpu.dot_dimension_numbers<[1], [0], [0], [1], [0, 0, 1, 1], [], []>} : vector<16x16xf32>, vector<16x16xf32>, vector<16x16xf32> -> vector<16x16xf32>
    %cst_61 = arith.constant dense<0.000000e+00> : vector<16x16xf32>
    %109 = tpu.matmul %0, %108, %cst_61 {dimension_numbers = #tpu.dot_dimension_numbers<[1], [0], [0], [1], [0, 0, 1, 1], [], []>} : vector<16x16xf32>, vector<16x16xf32>, vector<16x16xf32> -> vector<16x16xf32>
    %110 = arith.mulf %99, %101 : vector<16x16xf32>
    %111 = arith.mulf %99, %99 : vector<16x16xf32>
    %112 = arith.mulf %101, %101 : vector<16x16xf32>
    %113 = arith.addf %111, %112 : vector<16x16xf32>
    %cst_62 = arith.constant 2.000000e+00 : f32
    %114 = vector.broadcast %cst_62 : f32 to vector<16x16xf32>
    %115 = arith.mulf %114, %110 : vector<16x16xf32>
    %cst_63 = arith.constant 9.99999974E-5 : f32
    %116 = vector.broadcast %cst_63 : f32 to vector<16x16xf32>
    %117 = arith.addf %115, %116 : vector<16x16xf32>
    %118 = arith.subf %104, %110 : vector<16x16xf32>
    %cst_64 = arith.constant 2.000000e+00 : f32
    %119 = vector.broadcast %cst_64 : f32 to vector<16x16xf32>
    %120 = arith.mulf %119, %118 : vector<16x16xf32>
    %cst_65 = arith.constant 8.99999984E-4 : f32
    %121 = vector.broadcast %cst_65 : f32 to vector<16x16xf32>
    %122 = arith.addf %120, %121 : vector<16x16xf32>
    %123 = arith.mulf %117, %122 : vector<16x16xf32>
    %cst_66 = arith.constant 9.99999974E-5 : f32
    %124 = vector.broadcast %cst_66 : f32 to vector<16x16xf32>
    %125 = arith.addf %113, %124 : vector<16x16xf32>
    %126 = arith.subf %109, %113 : vector<16x16xf32>
    %cst_67 = arith.constant 8.99999984E-4 : f32
    %127 = vector.broadcast %cst_67 : f32 to vector<16x16xf32>
    %128 = arith.addf %126, %127 : vector<16x16xf32>
    %129 = arith.mulf %125, %128 : vector<16x16xf32>
    %130 = tpu.reciprocal %129 : vector<16x16xf32> -> vector<16x16xf32>
    %131 = arith.mulf %123, %130 : vector<16x16xf32>
    %132 = vector.shape_cast %131 : vector<16x16xf32> to vector<1x16x16xf32>
    %cst_68 = arith.constant dense<0.000000e+00> : vector<1xf32>
    %133 = vector.multi_reduction <add>, %132, %cst_68 [1, 2] : vector<1x16x16xf32> to vector<1xf32>
    %134 = vector.shape_cast %133 : vector<1xf32> to vector<1x1x1xf32>
    %135 = vector.extract %134[0, 0, 0] : f32 from vector<1x1x1xf32>
    %136 = vector.broadcast %135 : f32 to vector<1x128xf32>
    %c0_69 = arith.constant 0 : index
    %c2_70 = arith.constant 2 : index
    %c0_71 = arith.constant 0 : index
    %137 = vector.load %arg5[%c0_69, %c2_70, %c0_71] : memref<1x4x128xf32, #tpu.memory_space<vmem>>, vector<1x1x128xf32>
    %138 = vector.shape_cast %137 : vector<1x1x128xf32> to vector<1x128xf32>
    %139 = vector.shape_cast %136 : vector<1x128xf32> to vector<1x1x128xf32>
    tpu.vector_store %arg5[%c0_69, %c2_70, %c0_71], %139 {strides = array<i32>} : memref<1x4x128xf32, #tpu.memory_space<vmem>>, vector<1x1x128xf32>,
    %c3 = arith.constant 3 : index
    %c0_72 = arith.constant 0 : index
    %c0_73 = arith.constant 0 : index
    %140 = vector.load %arg1[%c3, %c0_72, %c0_73] : memref<4x16x16xf32, #tpu.memory_space<vmem>>, vector<1x16x16xf32>
    %141 = vector.shape_cast %140 : vector<1x16x16xf32> to vector<16x16xf32>
    %c3_74 = arith.constant 3 : index
    %c0_75 = arith.constant 0 : index
    %c0_76 = arith.constant 0 : index
    %142 = vector.load %arg2[%c3_74, %c0_75, %c0_76] : memref<4x16x16xf32, #tpu.memory_space<vmem>>, vector<1x16x16xf32>
    %143 = vector.shape_cast %142 : vector<1x16x16xf32> to vector<16x16xf32>
    %cst_77 = arith.constant dense<0.000000e+00> : vector<16x16xf32>
    %144 = tpu.matmul %141, %1, %cst_77 {dimension_numbers = #tpu.dot_dimension_numbers<[1], [0], [0], [1], [0, 0, 1, 1], [], []>} : vector<16x16xf32>, vector<16x16xf32>, vector<16x16xf32> -> vector<16x16xf32>
    %cst_78 = arith.constant dense<0.000000e+00> : vector<16x16xf32>
    %145 = tpu.matmul %0, %144, %cst_78 {dimension_numbers = #tpu.dot_dimension_numbers<[1], [0], [0], [1], [0, 0, 1, 1], [], []>} : vector<16x16xf32>, vector<16x16xf32>, vector<16x16xf32> -> vector<16x16xf32>
    %cst_79 = arith.constant dense<0.000000e+00> : vector<16x16xf32>
    %146 = tpu.matmul %143, %1, %cst_79 {dimension_numbers = #tpu.dot_dimension_numbers<[1], [0], [0], [1], [0, 0, 1, 1], [], []>} : vector<16x16xf32>, vector<16x16xf32>, vector<16x16xf32> -> vector<16x16xf32>
    %cst_80 = arith.constant dense<0.000000e+00> : vector<16x16xf32>
    %147 = tpu.matmul %0, %146, %cst_80 {dimension_numbers = #tpu.dot_dimension_numbers<[1], [0], [0], [1], [0, 0, 1, 1], [], []>} : vector<16x16xf32>, vector<16x16xf32>, vector<16x16xf32> -> vector<16x16xf32>
    %148 = arith.mulf %141, %143 : vector<16x16xf32>
    %cst_81 = arith.constant dense<0.000000e+00> : vector<16x16xf32>
    %149 = tpu.matmul %148, %1, %cst_81 {dimension_numbers = #tpu.dot_dimension_numbers<[1], [0], [0], [1], [0, 0, 1, 1], [], []>} : vector<16x16xf32>, vector<16x16xf32>, vector<16x16xf32> -> vector<16x16xf32>
    %cst_82 = arith.constant dense<0.000000e+00> : vector<16x16xf32>
    %150 = tpu.matmul %0, %149, %cst_82 {dimension_numbers = #tpu.dot_dimension_numbers<[1], [0], [0], [1], [0, 0, 1, 1], [], []>} : vector<16x16xf32>, vector<16x16xf32>, vector<16x16xf32> -> vector<16x16xf32>
    %151 = arith.mulf %141, %141 : vector<16x16xf32>
    %152 = arith.mulf %143, %143 : vector<16x16xf32>
    %153 = arith.addf %151, %152 : vector<16x16xf32>
    %cst_83 = arith.constant dense<0.000000e+00> : vector<16x16xf32>
    %154 = tpu.matmul %153, %1, %cst_83 {dimension_numbers = #tpu.dot_dimension_numbers<[1], [0], [0], [1], [0, 0, 1, 1], [], []>} : vector<16x16xf32>, vector<16x16xf32>, vector<16x16xf32> -> vector<16x16xf32>
    %cst_84 = arith.constant dense<0.000000e+00> : vector<16x16xf32>
    %155 = tpu.matmul %0, %154, %cst_84 {dimension_numbers = #tpu.dot_dimension_numbers<[1], [0], [0], [1], [0, 0, 1, 1], [], []>} : vector<16x16xf32>, vector<16x16xf32>, vector<16x16xf32> -> vector<16x16xf32>
    %156 = arith.mulf %145, %147 : vector<16x16xf32>
    %157 = arith.mulf %145, %145 : vector<16x16xf32>
    %158 = arith.mulf %147, %147 : vector<16x16xf32>
    %159 = arith.addf %157, %158 : vector<16x16xf32>
    %cst_85 = arith.constant 2.000000e+00 : f32
    %160 = vector.broadcast %cst_85 : f32 to vector<16x16xf32>
    %161 = arith.mulf %160, %156 : vector<16x16xf32>
    %cst_86 = arith.constant 9.99999974E-5 : f32
    %162 = vector.broadcast %cst_86 : f32 to vector<16x16xf32>
    %163 = arith.addf %161, %162 : vector<16x16xf32>
    %164 = arith.subf %150, %156 : vector<16x16xf32>
    %cst_87 = arith.constant 2.000000e+00 : f32
    %165 = vector.broadcast %cst_87 : f32 to vector<16x16xf32>
    %166 = arith.mulf %165, %164 : vector<16x16xf32>
    %cst_88 = arith.constant 8.99999984E-4 : f32
    %167 = vector.broadcast %cst_88 : f32 to vector<16x16xf32>
    %168 = arith.addf %166, %167 : vector<16x16xf32>
    %169 = arith.mulf %163, %168 : vector<16x16xf32>
    %cst_89 = arith.constant 9.99999974E-5 : f32
    %170 = vector.broadcast %cst_89 : f32 to vector<16x16xf32>
    %171 = arith.addf %159, %170 : vector<16x16xf32>
    %172 = arith.subf %155, %159 : vector<16x16xf32>
    %cst_90 = arith.constant 8.99999984E-4 : f32
    %173 = vector.broadcast %cst_90 : f32 to vector<16x16xf32>
    %174 = arith.addf %172, %173 : vector<16x16xf32>
    %175 = arith.mulf %171, %174 : vector<16x16xf32>
    %176 = tpu.reciprocal %175 : vector<16x16xf32> -> vector<16x16xf32>
    %177 = arith.mulf %169, %176 : vector<16x16xf32>
    %178 = vector.shape_cast %177 : vector<16x16xf32> to vector<1x16x16xf32>
    %cst_91 = arith.constant dense<0.000000e+00> : vector<1xf32>
    %179 = vector.multi_reduction <add>, %178, %cst_91 [1, 2] : vector<1x16x16xf32> to vector<1xf32>
    %180 = vector.shape_cast %179 : vector<1xf32> to vector<1x1x1xf32>
    %181 = vector.extract %180[0, 0, 0] : f32 from vector<1x1x1xf32>
    %182 = vector.broadcast %181 : f32 to vector<1x128xf32>
    %c0_92 = arith.constant 0 : index
    %c3_93 = arith.constant 3 : index
    %c0_94 = arith.constant 0 : index
    %183 = vector.load %arg5[%c0_92, %c3_93, %c0_94] : memref<1x4x128xf32, #tpu.memory_space<vmem>>, vector<1x1x128xf32>
    %184 = vector.shape_cast %183 : vector<1x1x128xf32> to vector<1x128xf32>
    %185 = vector.shape_cast %182 : vector<1x128xf32> to vector<1x1x128xf32>
    tpu.vector_store %arg5[%c0_92, %c3_93, %c0_94], %185 {strides = array<i32>} : memref<1x4x128xf32, #tpu.memory_space<vmem>>, vector<1x1x128xf32>,
    return
  }
  func.func @transform_0(%arg0: i32) -> (i32, i32, i32) {
    %c0_i32 = arith.constant 0 : i32
    %c0_i32_0 = arith.constant 0 : i32
    %c0_i32_1 = arith.constant 0 : i32
    return %arg0, %c0_i32, %c0_i32_0 : i32, i32, i32
  }
  func.func @transform_1(%arg0: i32) -> (i32, i32, i32) {
    %c0_i32 = arith.constant 0 : i32
    %c0_i32_0 = arith.constant 0 : i32
    %c0_i32_1 = arith.constant 0 : i32
    return %arg0, %c0_i32, %c0_i32_0 : i32, i32, i32
  }
  func.func @transform_2(%arg0: i32) -> (i32, i32) {
    %c0_i32 = arith.constant 0 : i32
    %c0_i32_0 = arith.constant 0 : i32
    %c0_i32_1 = arith.constant 0 : i32
    return %c0_i32, %c0_i32_0 : i32, i32
  }
  func.func @transform_3(%arg0: i32) -> (i32, i32) {
    %c0_i32 = arith.constant 0 : i32
    %c0_i32_0 = arith.constant 0 : i32
    %c0_i32_1 = arith.constant 0 : i32
    return %c0_i32, %c0_i32_0 : i32, i32
  }
  func.func @transform_4(%arg0: i32) -> (i32, i32, i32) {
    %c0_i32 = arith.constant 0 : i32
    %c0_i32_0 = arith.constant 0 : i32
    %c0_i32_1 = arith.constant 0 : i32
    return %arg0, %c0_i32, %c0_i32_0 : i32, i32, i32
  }
}

</mosaic_0001>

<llo_original>
// kernel: tpu_custom_call.1
$region0: #{tpu_custom_call.1}
  #allocation0 [shape = 'u32[]', space=smem, size = 0x4, offset = 0x4, fixed_abs, tag = 'smem constant byte address 0x4 - core index']
  #allocation1 [shape = 'u32[72,128]{1,0:T(1,128)}', space=vmem, size = 0x9000, scoped, tag = 'internal scratch']
  %s0 = inlined_call_operand.hbm [shape: f32[8,16,16], index: 0, kind: input, shape index: {}]
  %s1 = inlined_call_operand.hbm [shape: f32[8,16,16], index: 1, kind: input, shape index: {}]
  %s2 = inlined_call_operand.hbm [shape: f32[16,16], index: 2, kind: input, shape index: {}]
  %s3 = inlined_call_operand.hbm [shape: f32[16,16], index: 3, kind: input, shape index: {}]
  %s4 = inlined_call_operand.hbm [shape: f32[2,4,128], index: 4, kind: output, shape index: {}]
  %s5 = sld [smem:[#allocation0]]
  $region65: #{tpu_custom_call.1} parent=0
    _
  %s7 = ssub.s32 1, %s5
  %s8 = scalar_select 0, %s7, %s5
  $region1: #{tpu_custom_call.1} parent=0
    #allocation2 [shape = 'u8[65536]{0}', space=vmem, size = 0x10000, scoped, tag = 'input window, operand 0']
    #allocation3 [shape = 's32[2]{0}', space=sflag, size = 0x8, scoped, tag = 'scoped memory for tpu_custom_call.1']
    #allocation4 [shape = 's32[2]{0}', space=sflag, size = 0x8, scoped, tag = 'scoped memory for tpu_custom_call.1']
    #allocation5 [shape = 'u8[65536]{0}', space=vmem, size = 0x10000, scoped, tag = 'input window, operand 1']
    #allocation6 [shape = 's32[2]{0}', space=sflag, size = 0x8, scoped, tag = 'scoped memory for tpu_custom_call.1']
    #allocation7 [shape = 'u8[8192]{0}', space=vmem, size = 0x2000, scoped, tag = 'input window, operand 2, single buffered']
    #allocation8 [shape = 'u8[8192]{0}', space=vmem, size = 0x2000, scoped, tag = 'input window, operand 3, single buffered']
    #allocation9 [shape = 's32[1]{0}', space=sflag, size = 0x4, scoped, tag = 'scoped memory for tpu_custom_call.1']
    #allocation10 [shape = 'u8[4096]{0}', space=vmem, size = 0x1000, scoped, tag = 'output window, operand 0']
    %9 = vsyncpa [#allocation3], 0
    %s10 = scalar_lea.sflag [#allocation3], 1
    %11 = vsyncpa %s10, 0
    %12 = vsyncpa [#allocation6], 0
    %s13 = scalar_lea.sflag [#allocation6], 1
    %14 = vsyncpa %s13, 0
    %15 = vsyncpa [#allocation9], 0
    %16 = vsyncpa [#allocation4], 0
    %s17 = scalar_lea.sflag [#allocation4], 1
    %18 = vsyncpa %s17, 0
    loop: start=0, step=1, limit=4
    $region2: #{tpu_custom_call.1} parent=1 // loop_pre_header
      _
    $region3: #{tpu_custom_call.1} parent=1 // loop_header
      %s20 = sphi 0, %s24
      %p21 = scmp.ge.s32.totalorder %s20, 4
      %s30 = sphi 0, %s32
      %s33 = sphi 0, %s30
      %s34 = sphi 0, %s33
      %s50 = sphi 0, %s34
      %s56 = sphi 0, %s58
      %s59 = sphi 0, %s56
      %s60 = sphi 0, %s59
      %s76 = sphi 0, %s60
      %s80 = sphi 0, %s80
      %s82 = sphi 0, %s80
      %s83 = sphi 0, %s82
      %s97 = sphi 0, %s83
      %s101 = sphi 0, %s101
      %s103 = sphi 0, %s101
      %s104 = sphi 0, %s103
      %s118 = sphi 0, %s104
      %s124 = sphi 0, %s126
      %s127 = sphi 0, %s124
      %s128 = sphi 0, %s127
      %s144 = sphi 0, %s128
    $region4: #{tpu_custom_call.1} parent=1 // loop_header_branch
      %23 = sbr.rel (%p21) target = $region8
    $region5: #{tpu_custom_call.1} parent=1 // loop_body
      %s25 = ssub.s32 %s20, 1
      %s26 = ssub.s32 %s20, 2
      %s27 = sadd.s32 %s20, 1
      %s28 = ssub.s32 %s20, %s27
      %p29 = scmp.eq.s32.totalorder %s28, 0
      %s31 = sadd.s32 %s30, 1
      %s32 = scalar_select %p29, %s30, %s31
      %p35 = pneg %p29
      %p36 = scmp.eq.s32.totalorder %s20, 1
      %p37 = por %p35, %p36
      %p38 = scmp.ne.s32.totalorder %s30, %s33
      %p39 = scmp.eq.s32.totalorder %s20, 0
      %p40 = por %p38, %p39
      %p41 = scmp.ne.s32.totalorder %s30, %s33
      %p42 = scmp.eq.s32.totalorder %s25, 1
      %p43 = por %p41, %p42
      %p44 = scmp.ne.s32.totalorder %s33, %s34
      %p45 = scmp.eq.s32.totalorder %s25, 0
      %p46 = por %p44, %p45
      %p47 = scmp.ne.s32.totalorder %s33, %s34
      %p48 = scmp.eq.s32.totalorder %s26, 1
      %p49 = por %p47, %p48
      %p51 = scmp.ne.s32.totalorder %s34, %s50
      %p52 = scmp.eq.s32.totalorder %s26, 0
      %p53 = por %p51, %p52
      %s54 = ssub.s32 %s20, %s27
      %p55 = scmp.eq.s32.totalorder %s54, 0
      %s57 = sadd.s32 %s56, 1
      %s58 = scalar_select %p55, %s56, %s57
      %p61 = pneg %p55
      %p62 = scmp.eq.s32.totalorder %s20, 1
      %p63 = por %p61, %p62
      %p64 = scmp.ne.s32.totalorder %s56, %s59
      %p65 = scmp.eq.s32.totalorder %s20, 0
      %p66 = por %p64, %p65
      %p67 = scmp.ne.s32.totalorder %s56, %s59
      %p68 = scmp.eq.s32.totalorder %s25, 1
      %p69 = por %p67, %p68
      %p70 = scmp.ne.s32.totalorder %s59, %s60
      %p71 = scmp.eq.s32.totalorder %s25, 0
      %p72 = por %p70, %p71
      %p73 = scmp.ne.s32.totalorder %s59, %s60
      %p74 = scmp.eq.s32.totalorder %s26, 1
      %p75 = por %p73, %p74
      %p77 = scmp.ne.s32.totalorder %s60, %s76
      %p78 = scmp.eq.s32.totalorder %s26, 0
      %p79 = por %p77, %p78
      %s81 = sadd.s32 %s80, 1
      %p84 = scmp.eq.s32.totalorder %s20, 1
      %p85 = scmp.ne.s32.totalorder %s80, %s82
      %p86 = scmp.eq.s32.totalorder %s20, 0
      %p87 = por %p85, %p86
      %p88 = scmp.ne.s32.totalorder %s80, %s82
      %p89 = scmp.eq.s32.totalorder %s25, 1
      %p90 = por %p88, %p89
      %p91 = scmp.ne.s32.totalorder %s82, %s83
      %p92 = scmp.eq.s32.totalorder %s25, 0
      %p93 = por %p91, %p92
      %p94 = scmp.ne.s32.totalorder %s82, %s83
      %p95 = scmp.eq.s32.totalorder %s26, 1
      %p96 = por %p94, %p95
      %p98 = scmp.ne.s32.totalorder %s83, %s97
      %p99 = scmp.eq.s32.totalorder %s26, 0
      %p100 = por %p98, %p99
      %s102 = sadd.s32 %s101, 1
      %p105 = scmp.eq.s32.totalorder %s20, 1
      %p106 = scmp.ne.s32.totalorder %s101, %s103
      %p107 = scmp.eq.s32.totalorder %s20, 0
      %p108 = por %p106, %p107
      %p109 = scmp.ne.s32.totalorder %s101, %s103
      %p110 = scmp.eq.s32.totalorder %s25, 1
      %p111 = por %p109, %p110
      %p112 = scmp.ne.s32.totalorder %s103, %s104
      %p113 = scmp.eq.s32.totalorder %s25, 0
      %p114 = por %p112, %p113
      %p115 = scmp.ne.s32.totalorder %s103, %s104
      %p116 = scmp.eq.s32.totalorder %s26, 1
      %p117 = por %p115, %p116
      %p119 = scmp.ne.s32.totalorder %s104, %s118
      %p120 = scmp.eq.s32.totalorder %s26, 0
      %p121 = por %p119, %p120
      %s122 = ssub.s32 %s20, %s27
      %p123 = scmp.eq.s32.totalorder %s122, 0
      %s125 = sadd.s32 %s124, 1
      %s126 = scalar_select %p123, %s124, %s125
      %p129 = pneg %p123
      %p130 = scmp.eq.s32.totalorder %s20, 1
      %p131 = por %p129, %p130
      %p132 = scmp.ne.s32.totalorder %s124, %s127
      %p133 = scmp.eq.s32.totalorder %s20, 0
      %p134 = por %p132, %p133
      %p135 = scmp.ne.s32.totalorder %s124, %s127
      %p136 = scmp.eq.s32.totalorder %s25, 1
      %p137 = por %p135, %p136
      %p138 = scmp.ne.s32.totalorder %s127, %s128
      %p139 = scmp.eq.s32.totalorder %s25, 0
      %p140 = por %p138, %p139
      %p141 = scmp.ne.s32.totalorder %s127, %s128
      %p142 = scmp.eq.s32.totalorder %s26, 1
      %p143 = por %p141, %p142
      %p145 = scmp.ne.s32.totalorder %s128, %s144
      %p146 = scmp.eq.s32.totalorder %s26, 0
      %p147 = por %p145, %p146
      %p148 = scmp.le.s32.totalorder 1, %s20
      %p149 = scmp.lt.s32.totalorder %s20, 3
      %p150 = pnand %p148, %p149
      %p151 = pneg %p150
      // Predicated region
      $region9: #{tpu_custom_call.1} parent=5 // pred_check
        _
      $region10: #{tpu_custom_call.1} parent=5 // pred_check_branch
        %153 = sbr.rel (%p150) target = $region12
      $region11: #{tpu_custom_call.1} parent=5 // pred_region
        %s154 = ssub.s32 %s20, 1
        // Predicated region
        $region13: #{tpu_custom_call.1} parent=11 // pred_check
          %p155 = pneg %p93
        $region14: #{tpu_custom_call.1} parent=11 // pred_check_branch
          %157 = sbr.rel (%p155) target = $region16
        $region15: #{tpu_custom_call.1} parent=11 // pred_region
          %159 = vsyncadd [#allocation6], 0
          %s160 = sshll.u32 %s2, 4
          %s161 = int_to_ptr.hbm [resolvable:$true] %s160
          %s162 = sshll.u32 [#allocation7], 4
          %s163 = int_to_ptr.vmem [resolvable:$true] %s162
          %168 = dma.hbm_to_vmem [thread:$0]  %s161, 256, %s163, [#allocation6], 128, 128, 8
        $region16: #{tpu_custom_call.1} parent=11 // pred_fallthru
          _
        // Predicated region
        $region17: #{tpu_custom_call.1} parent=11 // pred_check
          %p169 = pneg %p114
        $region18: #{tpu_custom_call.1} parent=11 // pred_check_branch
          %171 = sbr.rel (%p169) target = $region20
        $region19: #{tpu_custom_call.1} parent=11 // pred_region
          %173 = vsyncadd [#allocation9], 0
          %s174 = sshll.u32 %s3, 4
          %s175 = int_to_ptr.hbm [resolvable:$true] %s174
          %s176 = sshll.u32 [#allocation8], 4
          %s177 = int_to_ptr.vmem [resolvable:$true] %s176
          %182 = dma.hbm_to_vmem [thread:$0]  %s175, 256, %s177, [#allocation9], 128, 128, 8
        $region20: #{tpu_custom_call.1} parent=11 // pred_fallthru
          _
      $region12: #{tpu_custom_call.1} parent=5 // pred_fallthru
        _
      %p183 = scmp.lt.s32.totalorder %s20, 2
      // Predicated region
      $region21: #{tpu_custom_call.1} parent=5 // pred_check
        %p184 = pneg %p183
      $region22: #{tpu_custom_call.1} parent=5 // pred_check_branch
        %186 = sbr.rel (%p184) target = $region24
      $region23: #{tpu_custom_call.1} parent=5 // pred_region
        // Predicated region
        $region25: #{tpu_custom_call.1} parent=23 // pred_check
          %p187 = pneg %p40
        $region26: #{tpu_custom_call.1} parent=23 // pred_check_branch
          %189 = sbr.rel (%p187) target = $region28
        $region27: #{tpu_custom_call.1} parent=23 // pred_region
          %s190 = sand.u32 %s30, 1
          %s191 = scalar_lea.sflag [#allocation3], %s190
          %s192 = sand.u32 %s30, 1
          %s193 = smul.addr %s192, 64
          %s194 = scalar_lea.vmem [#allocation2], %s193
          %s195 = smul.u32 4, %s20
          %197 = vsyncadd %s191, 0
          %s198 = smul.addr %s195, 2
          %s199 = smul.addr %s198, 8
          %s200 = scalar_lea.hbm %s0, %s199
          %s201 = sshll.u32 %s200, 4
          %s202 = int_to_ptr.hbm [resolvable:$true] %s201
          %s203 = sshll.u32 %s194, 4
          %s204 = int_to_ptr.vmem [resolvable:$true] %s203
          %209 = dma.hbm_to_vmem [thread:$0]  %s202, 1024, %s204, %s191, 128, 128, 8
        $region28: #{tpu_custom_call.1} parent=23 // pred_fallthru
          _
        // Predicated region
        $region29: #{tpu_custom_call.1} parent=23 // pred_check
          %p210 = pneg %p66
        $region30: #{tpu_custom_call.1} parent=23 // pred_check_branch
          %212 = sbr.rel (%p210) target = $region32
        $region31: #{tpu_custom_call.1} parent=23 // pred_region
          %s213 = sand.u32 %s20, 1
          %s214 = scalar_lea.sflag [#allocation6], %s213
          %s215 = sand.u32 %s56, 1
          %s216 = smul.addr %s215, 64
          %s217 = scalar_lea.vmem [#allocation5], %s216
          %s218 = smul.u32 4, %s20
          %220 = vsyncadd %s214, 0
          %s221 = smul.addr %s218, 2
          %s222 = smul.addr %s221, 8
          %s223 = scalar_lea.hbm %s1, %s222
          %s224 = sshll.u32 %s223, 4
          %s225 = int_to_ptr.hbm [resolvable:$true] %s224
          %s226 = sshll.u32 %s217, 4
          %s227 = int_to_ptr.vmem [resolvable:$true] %s226
          %232 = dma.hbm_to_vmem [thread:$0]  %s225, 1024, %s227, %s214, 128, 128, 8
        $region32: #{tpu_custom_call.1} parent=23 // pred_fallthru
          _
      $region24: #{tpu_custom_call.1} parent=5 // pred_fallthru
        _
      %p233 = scmp.le.s32.totalorder 1, %s20
      %p234 = scmp.lt.s32.totalorder %s20, 3
      %p235 = pnand %p233, %p234
      %p236 = pneg %p235
      // Predicated region
      $region33: #{tpu_custom_call.1} parent=5 // pred_check
        _
      $region34: #{tpu_custom_call.1} parent=5 // pred_check_branch
        %238 = sbr.rel (%p235) target = $region36
      $region35: #{tpu_custom_call.1} parent=5 // pred_region
        %s239 = ssub.s32 %s20, 1
        %s240 = sand.u32 %s33, 1
        %s241 = scalar_lea.sflag [#allocation3], %s240
        %s242 = sand.u32 %s33, 1
        %s243 = smul.addr %s242, 64
        %s244 = scalar_lea.vmem [#allocation2], %s243
        // Predicated region
        $region37: #{tpu_custom_call.1} parent=35 // pred_check
          %p245 = pneg %p46
        $region38: #{tpu_custom_call.1} parent=35 // pred_check_branch
          %247 = sbr.rel (%p245) target = $region40
        $region39: #{tpu_custom_call.1} parent=35 // pred_region
          %249 = dma.done %s241, 1024
        $region40: #{tpu_custom_call.1} parent=35 // pred_fallthru
          _
        %s250 = sand.u32 %s25, 1
        %s251 = scalar_lea.sflag [#allocation6], %s250
        %s252 = sand.u32 %s59, 1
        %s253 = smul.addr %s252, 64
        %s254 = scalar_lea.vmem [#allocation5], %s253
        // Predicated region
        $region41: #{tpu_custom_call.1} parent=35 // pred_check
          %p255 = pneg %p72
        $region42: #{tpu_custom_call.1} parent=35 // pred_check_branch
          %257 = sbr.rel (%p255) target = $region44
        $region43: #{tpu_custom_call.1} parent=35 // pred_region
          %259 = dma.done %s251, 1024
        $region44: #{tpu_custom_call.1} parent=35 // pred_fallthru
          _
        // Predicated region
        $region45: #{tpu_custom_call.1} parent=35 // pred_check
          %p260 = pneg %p93
        $region46: #{tpu_custom_call.1} parent=35 // pred_check_branch
          %262 = sbr.rel (%p260) target = $region48
        $region47: #{tpu_custom_call.1} parent=35 // pred_region
          %264 = dma.done [#allocation6], 256
        $region48: #{tpu_custom_call.1} parent=35 // pred_fallthru
          _
        // Predicated region
        $region49: #{tpu_custom_call.1} parent=35 // pred_check
          %p265 = pneg %p114
        $region50: #{tpu_custom_call.1} parent=35 // pred_check_branch
          %267 = sbr.rel (%p265) target = $region52
        $region51: #{tpu_custom_call.1} parent=35 // pred_region
          %269 = dma.done [#allocation9], 256
        $region52: #{tpu_custom_call.1} parent=35 // pred_fallthru
          _
        %s270 = sand.u32 %s33, 1
        %s271 = scalar_lea.sflag [#allocation3], %s270
        %s272 = sand.u32 %s33, 1
        %s273 = smul.addr %s272, 64
        %s274 = scalar_lea.vmem [#allocation2], %s273
        %p275 = pneg %p46
        %p276 = pneg %p43
        %s277 = sand.u32 %s25, 1
        %s278 = scalar_lea.sflag [#allocation6], %s277
        %s279 = sand.u32 %s59, 1
        %s280 = smul.addr %s279, 64
        %s281 = scalar_lea.vmem [#allocation5], %s280
        %p282 = pneg %p72
        %p283 = pneg %p69
        %p284 = pneg %p93
        %p285 = pneg %p90
        %p286 = pneg %p114
        %p287 = pneg %p111
        %p288 = pneg %p140
        %p289 = pneg %p137
        %s290 = sand.u32 %s127, 1
        %s291 = scalar_lea.sflag [#allocation4], %s290
        %s292 = sand.u32 %s127, 1
        %s293 = smul.addr %s292, 4
        %s294 = scalar_lea.vmem [#allocation10], %s293
        %s295 = smul.u32 4, %s25
        %s296 = smul.u32 4, %s25
        %v297 = vld [vmem:[#allocation7] sm:$0xff]
        %v298 = vld [vmem:[#allocation7 + $0x8] sm:$0xff]
        %v299 = vld [vmem:[#allocation8] sm:$0xff]
        %v300 = vld [vmem:[#allocation8 + $0x8] sm:$0xff]
        %v301 = vld [vmem:[%s244] sm:$0xff]
        %v302 = vld [vmem:[%s244 + $0x8] sm:$0xff]
        %v303 = vld [vmem:[%s254] sm:$0xff]
        %v304 = vld [vmem:[%s254 + $0x8] sm:$0xff]
        %vm305 = vcmask 130048
        %v307 = vsel %vm305, %v301, 0
        %v310 = vsel %vm305, %v302, 0
        %312 = vmatpush.msra.mxu0 0.0
        %313 = vmatpush.msra.mxu0 0.0
        %314 = vmatpush.msra.mxu0 0.0
        %315 = vmatpush.msra.mxu0 0.0
        %316 = vmatpush.msra.mxu0 0.0
        %317 = vmatpush.msra.mxu0 0.0
        %318 = vmatpush.msra.mxu0 0.0
        %319 = vmatpush.msra.mxu0 0.0
        %320 = vmatpush.msra.mxu0 0.0
        %321 = vmatpush.msra.mxu0 0.0
        %322 = vmatpush.msra.mxu0 0.0
        %323 = vmatpush.msra.mxu0 0.0
        %324 = vmatpush.msra.mxu0 0.0
        %325 = vmatpush.msra.mxu0 0.0
        %326 = vmatpush.msra.mxu0 %v300
        %327 = vmatpush.msra.mxu0 %v299
        %328 = vmatmul.f32.gmra.mxu0 %v307
        %v329 = vpop.f32.mrf.mxu0
        %v330 = vadd.f32 0.0, %v329
        %331 = vmatmul.f32.gmra.mxu0 %v310
        %v332 = vpop.f32.mrf.mxu0
        %v333 = vadd.f32 0.0, %v332
        %334 = vdwg.mxu0
        %v336 = vsel %vm305, %v297, 0
        %v339 = vsel %vm305, %v298, 0
        %341 = vmatpush.msra.mxu0 0.0
        %342 = vmatpush.msra.mxu0 0.0
        %343 = vmatpush.msra.mxu0 0.0
        %344 = vmatpush.msra.mxu0 0.0
        %345 = vmatpush.msra.mxu0 0.0
        %346 = vmatpush.msra.mxu0 0.0
        %347 = vmatpush.msra.mxu0 0.0
        %348 = vmatpush.msra.mxu0 0.0
        %349 = vmatpush.msra.mxu0 0.0
        %350 = vmatpush.msra.mxu0 0.0
        %351 = vmatpush.msra.mxu0 0.0
        %352 = vmatpush.msra.mxu0 0.0
        %353 = vmatpush.msra.mxu0 0.0
        %354 = vmatpush.msra.mxu0 0.0
        %355 = vmatpush.msra.mxu0 %v333
        %356 = vmatpush.msra.mxu0 %v330
        %357 = vmatmul.f32.gmra.mxu0 %v336
        %v358 = vpop.f32.mrf.mxu0
        %v359 = vadd.f32 0.0, %v358
        %360 = vmatmul.f32.gmra.mxu0 %v339
        %v361 = vpop.f32.mrf.mxu0
        %v362 = vadd.f32 0.0, %v361
        %363 = vdwg.mxu0
        %v365 = vsel %vm305, %v303, 0
        %v368 = vsel %vm305, %v304, 0
        %370 = vmatpush.msra.mxu0 0.0
        %371 = vmatpush.msra.mxu0 0.0
        %372 = vmatpush.msra.mxu0 0.0
        %373 = vmatpush.msra.mxu0 0.0
        %374 = vmatpush.msra.mxu0 0.0
        %375 = vmatpush.msra.mxu0 0.0
        %376 = vmatpush.msra.mxu0 0.0
        %377 = vmatpush.msra.mxu0 0.0
        %378 = vmatpush.msra.mxu0 0.0
        %379 = vmatpush.msra.mxu0 0.0
        %380 = vmatpush.msra.mxu0 0.0
        %381 = vmatpush.msra.mxu0 0.0
        %382 = vmatpush.msra.mxu0 0.0
        %383 = vmatpush.msra.mxu0 0.0
        %384 = vmatpush.msra.mxu0 %v300
        %385 = vmatpush.msra.mxu0 %v299
        %386 = vmatmul.f32.gmra.mxu0 %v365
        %v387 = vpop.f32.mrf.mxu0
        %v388 = vadd.f32 0.0, %v387
        %389 = vmatmul.f32.gmra.mxu0 %v368
        %v390 = vpop.f32.mrf.mxu0
        %v391 = vadd.f32 0.0, %v390
        %392 = vdwg.mxu0
        %393 = vmatpush.msra.mxu0 0.0
        %394 = vmatpush.msra.mxu0 0.0
        %395 = vmatpush.msra.mxu0 0.0
        %396 = vmatpush.msra.mxu0 0.0
        %397 = vmatpush.msra.mxu0 0.0
        %398 = vmatpush.msra.mxu0 0.0
        %399 = vmatpush.msra.mxu0 0.0
        %400 = vmatpush.msra.mxu0 0.0
        %401 = vmatpush.msra.mxu0 0.0
        %402 = vmatpush.msra.mxu0 0.0
        %403 = vmatpush.msra.mxu0 0.0
        %404 = vmatpush.msra.mxu0 0.0
        %405 = vmatpush.msra.mxu0 0.0
        %406 = vmatpush.msra.mxu0 0.0
        %407 = vmatpush.msra.mxu0 %v391
        %408 = vmatpush.msra.mxu0 %v388
        %409 = vmatmul.f32.gmra.mxu0 %v336
        %v410 = vpop.f32.mrf.mxu0
        %v411 = vadd.f32 0.0, %v410
        %412 = vmatmul.f32.gmra.mxu0 %v339
        %v413 = vpop.f32.mrf.mxu0
        %v414 = vadd.f32 0.0, %v413
        %415 = vdwg.mxu0
        %v416 = vmul.f32 %v301, %v303
        %v417 = vmul.f32 %v302, %v304
        %v419 = vsel %vm305, %v416, 0
        %v422 = vsel %vm305, %v417, 0
        %424 = vmatpush.msra.mxu0 0.0
        %425 = vmatpush.msra.mxu0 0.0
        %426 = vmatpush.msra.mxu0 0.0
        %427 = vmatpush.msra.mxu0 0.0
        %428 = vmatpush.msra.mxu0 0.0
        %429 = vmatpush.msra.mxu0 0.0
        %430 = vmatpush.msra.mxu0 0.0
        %431 = vmatpush.msra.mxu0 0.0
        %432 = vmatpush.msra.mxu0 0.0
        %433 = vmatpush.msra.mxu0 0.0
        %434 = vmatpush.msra.mxu0 0.0
        %435 = vmatpush.msra.mxu0 0.0
        %436 = vmatpush.msra.mxu0 0.0
        %437 = vmatpush.msra.mxu0 0.0
        %438 = vmatpush.msra.mxu0 %v300
        %439 = vmatpush.msra.mxu0 %v299
        %440 = vmatmul.f32.gmra.mxu0 %v419
        %v441 = vpop.f32.mrf.mxu0
        %v442 = vadd.f32 0.0, %v441
        %443 = vmatmul.f32.gmra.mxu0 %v422
        %v444 = vpop.f32.mrf.mxu0
        %v445 = vadd.f32 0.0, %v444
        %446 = vdwg.mxu0
        %447 = vmatpush.msra.mxu0 0.0
        %448 = vmatpush.msra.mxu0 0.0
        %449 = vmatpush.msra.mxu0 0.0
        %450 = vmatpush.msra.mxu0 0.0
        %451 = vmatpush.msra.mxu0 0.0
        %452 = vmatpush.msra.mxu0 0.0
        %453 = vmatpush.msra.mxu0 0.0
        %454 = vmatpush.msra.mxu0 0.0
        %455 = vmatpush.msra.mxu0 0.0
        %456 = vmatpush.msra.mxu0 0.0
        %457 = vmatpush.msra.mxu0 0.0
        %458 = vmatpush.msra.mxu0 0.0
        %459 = vmatpush.msra.mxu0 0.0
        %460 = vmatpush.msra.mxu0 0.0
        %461 = vmatpush.msra.mxu0 %v445
        %462 = vmatpush.msra.mxu0 %v442
        %463 = vmatmul.f32.gmra.mxu0 %v336
        %v464 = vpop.f32.mrf.mxu0
        %v465 = vadd.f32 0.0, %v464
        %466 = vmatmul.f32.gmra.mxu0 %v339
        %v467 = vpop.f32.mrf.mxu0
        %v468 = vadd.f32 0.0, %v467
        %469 = vdwg.mxu0
        %v470 = vmul.f32 %v301, %v301
        %v471 = vmul.f32 %v302, %v302
        %v472 = vmul.f32 %v303, %v303
        %v473 = vmul.f32 %v304, %v304
        %v474 = vadd.f32 %v470, %v472
        %v475 = vadd.f32 %v471, %v473
        %v477 = vsel %vm305, %v474, 0
        %v480 = vsel %vm305, %v475, 0
        %482 = vmatpush.msra.mxu0 0.0
        %483 = vmatpush.msra.mxu0 0.0
        %484 = vmatpush.msra.mxu0 0.0
        %485 = vmatpush.msra.mxu0 0.0
        %486 = vmatpush.msra.mxu0 0.0
        %487 = vmatpush.msra.mxu0 0.0
        %488 = vmatpush.msra.mxu0 0.0
        %489 = vmatpush.msra.mxu0 0.0
        %490 = vmatpush.msra.mxu0 0.0
        %491 = vmatpush.msra.mxu0 0.0
        %492 = vmatpush.msra.mxu0 0.0
        %493 = vmatpush.msra.mxu0 0.0
        %494 = vmatpush.msra.mxu0 0.0
        %495 = vmatpush.msra.mxu0 0.0
        %496 = vmatpush.msra.mxu0 %v300
        %497 = vmatpush.msra.mxu0 %v299
        %498 = vmatmul.f32.gmra.mxu0 %v477
        %v499 = vpop.f32.mrf.mxu0
        %v500 = vadd.f32 0.0, %v499
        %501 = vmatmul.f32.gmra.mxu0 %v480
        %v502 = vpop.f32.mrf.mxu0
        %v503 = vadd.f32 0.0, %v502
        %504 = vdwg.mxu0
        %505 = vmatpush.msra.mxu0 0.0
        %506 = vmatpush.msra.mxu0 0.0
        %507 = vmatpush.msra.mxu0 0.0
        %508 = vmatpush.msra.mxu0 0.0
        %509 = vmatpush.msra.mxu0 0.0
        %510 = vmatpush.msra.mxu0 0.0
        %511 = vmatpush.msra.mxu0 0.0
        %512 = vmatpush.msra.mxu0 0.0
        %513 = vmatpush.msra.mxu0 0.0
        %514 = vmatpush.msra.mxu0 0.0
        %515 = vmatpush.msra.mxu0 0.0
        %516 = vmatpush.msra.mxu0 0.0
        %517 = vmatpush.msra.mxu0 0.0
        %518 = vmatpush.msra.mxu0 0.0
        %519 = vmatpush.msra.mxu0 %v503
        %520 = vmatpush.msra.mxu0 %v500
        %521 = vmatmul.f32.gmra.mxu0 %v336
        %v522 = vpop.f32.mrf.mxu0
        %v523 = vadd.f32 0.0, %v522
        %524 = vmatmul.f32.gmra.mxu0 %v339
        %v525 = vpop.f32.mrf.mxu0
        %v526 = vadd.f32 0.0, %v525
        %527 = vdwg.mxu0
        %v528 = vmul.f32 %v359, %v411
        %v529 = vmul.f32 %v362, %v414
        %v530 = vmul.f32 %v359, %v359
        %v531 = vmul.f32 %v362, %v362
        %v532 = vmul.f32 %v411, %v411
        %v533 = vmul.f32 %v414, %v414
        %v534 = vadd.f32 %v530, %v532
        %v535 = vadd.f32 %v531, %v533
        %v536 = vmul.f32 %v528, 2.0
        %v537 = vmul.f32 %v529, 2.0
        %v538 = vadd.f32 %v536, 0.0001
        %v539 = vadd.f32 %v537, 0.0001
        %v540 = vsub.f32 %v465, %v528
        %v541 = vsub.f32 %v468, %v529
        %v542 = vmul.f32 %v540, 2.0
        %v543 = vmul.f32 %v541, 2.0
        %v544 = vadd.f32 %v542, 0.0009
        %v545 = vadd.f32 %v543, 0.0009
        %v546 = vmul.f32 %v538, %v544
        %v547 = vmul.f32 %v539, %v545
        %v548 = vadd.f32 %v534, 0.0001
        %v549 = vadd.f32 %v535, 0.0001
        %v550 = vsub.f32 %v523, %v534
        %v551 = vsub.f32 %v526, %v535
        %v552 = vadd.f32 %v550, 0.0009
        %v553 = vadd.f32 %v551, 0.0009
        %v554 = vmul.f32 %v548, %v552
        %v555 = vmul.f32 %v549, %v553
        %v556 = vrcp.pop %v554
        %v557 = vmul.f32 %v554, %v556
        %v558 = vsub.f32 1.0, %v557
        %v559 = vmul.f32 %v556, %v558
        %v560 = vadd.f32 %v556, %v559
        %vm561 = vweird.f32 %v554
        %vm562 = vweird.f32 %v556
        %vm563 = vmor %vm561, %vm562
        %v564 = vsel %vm563, %v556, %v560
        %v565 = vand.u32 2147483647, %v554
        %vm566 = vcmp.eq.f32.partialorder %v565, 8.507059e+37
        %v567 = vand.u32 %v554, 2147483648
        %v568 = vor.u32 1.1754944e-38, %v567
        %v569 = vsel %vm566, %v568, %v564
        %v570 = vrcp.pop %v555
        %v571 = vmul.f32 %v555, %v570
        %v572 = vsub.f32 1.0, %v571
        %v573 = vmul.f32 %v570, %v572
        %v574 = vadd.f32 %v570, %v573
        %vm575 = vweird.f32 %v555
        %vm576 = vweird.f32 %v570
        %vm577 = vmor %vm575, %vm576
        %v578 = vsel %vm577, %v570, %v574
        %v579 = vand.u32 2147483647, %v555
        %vm580 = vcmp.eq.f32.partialorder %v579, 8.507059e+37
        %v581 = vand.u32 %v555, 2147483648
        %v582 = vor.u32 1.1754944e-38, %v581
        %v583 = vsel %vm580, %v582, %v578
        %v584 = vmul.f32 %v546, %v569
        %v585 = vmul.f32 %v547, %v583
        %v586 = vsel %vm305, %v584, 0.0
        %v587 = vsel %vm305, %v585, 0.0
        %v588 = vadd.f32 %v586, %v587
        %589 = vadd.xlane.f32.xlu0 %v588
        %v590 = vpop.xlane.xlu0 %589
        %v591 = vrot.slane %v590, 4
        %v592 = vadd.f32 %v590, %v591
        %v593 = vrot.slane %v592, 2
        %v594 = vadd.f32 %v592, %v593
        %v595 = vrot.slane %v594, 1
        %v596 = vadd.f32 %v594, %v595
        %s597 = vtos %v596
        %v598 = vstv %s597
        %599 = vst [vmem:[%s294] sm:$0x1] %v598
        %s600 = scalar_lea.vmem %s244, 16 [#allocation2]
        %v601 = vld [vmem:[%s600] sm:$0xff]
        %v602 = vld [vmem:[%s600 + $0x8] sm:$0xff]
        %s603 = scalar_lea.vmem %s254, 16 [#allocation5]
        %v604 = vld [vmem:[%s603] sm:$0xff]
        %v605 = vld [vmem:[%s603 + $0x8] sm:$0xff]
        %v607 = vsel %vm305, %v601, 0
        %v610 = vsel %vm305, %v602, 0
        %612 = vmatpush.msra.mxu0 0.0
        %613 = vmatpush.msra.mxu0 0.0
        %614 = vmatpush.msra.mxu0 0.0
        %615 = vmatpush.msra.mxu0 0.0
        %616 = vmatpush.msra.mxu0 0.0
        %617 = vmatpush.msra.mxu0 0.0
        %618 = vmatpush.msra.mxu0 0.0
        %619 = vmatpush.msra.mxu0 0.0
        %620 = vmatpush.msra.mxu0 0.0
        %621 = vmatpush.msra.mxu0 0.0
        %622 = vmatpush.msra.mxu0 0.0
        %623 = vmatpush.msra.mxu0 0.0
        %624 = vmatpush.msra.mxu0 0.0
        %625 = vmatpush.msra.mxu0 0.0
        %626 = vmatpush.msra.mxu0 %v300
        %627 = vmatpush.msra.mxu0 %v299
        %628 = vmatmul.f32.gmra.mxu0 %v607
        %v629 = vpop.f32.mrf.mxu0
        %v630 = vadd.f32 0.0, %v629
        %631 = vmatmul.f32.gmra.mxu0 %v610
        %v632 = vpop.f32.mrf.mxu0
        %v633 = vadd.f32 0.0, %v632
        %634 = vdwg.mxu0
        %635 = vmatpush.msra.mxu0 0.0
        %636 = vmatpush.msra.mxu0 0.0
        %637 = vmatpush.msra.mxu0 0.0
        %638 = vmatpush.msra.mxu0 0.0
        %639 = vmatpush.msra.mxu0 0.0
        %640 = vmatpush.msra.mxu0 0.0
        %641 = vmatpush.msra.mxu0 0.0
        %642 = vmatpush.msra.mxu0 0.0
        %643 = vmatpush.msra.mxu0 0.0
        %644 = vmatpush.msra.mxu0 0.0
        %645 = vmatpush.msra.mxu0 0.0
        %646 = vmatpush.msra.mxu0 0.0
        %647 = vmatpush.msra.mxu0 0.0
        %648 = vmatpush.msra.mxu0 0.0
        %649 = vmatpush.msra.mxu0 %v633
        %650 = vmatpush.msra.mxu0 %v630
        %651 = vmatmul.f32.gmra.mxu0 %v336
        %v652 = vpop.f32.mrf.mxu0
        %v653 = vadd.f32 0.0, %v652
        %654 = vmatmul.f32.gmra.mxu0 %v339
        %v655 = vpop.f32.mrf.mxu0
        %v656 = vadd.f32 0.0, %v655
        %657 = vdwg.mxu0
        %v659 = vsel %vm305, %v604, 0
        %v662 = vsel %vm305, %v605, 0
        %664 = vmatpush.msra.mxu0 0.0
        %665 = vmatpush.msra.mxu0 0.0
        %666 = vmatpush.msra.mxu0 0.0
        %667 = vmatpush.msra.mxu0 0.0
        %668 = vmatpush.msra.mxu0 0.0
        %669 = vmatpush.msra.mxu0 0.0
        %670 = vmatpush.msra.mxu0 0.0
        %671 = vmatpush.msra.mxu0 0.0
        %672 = vmatpush.msra.mxu0 0.0
        %673 = vmatpush.msra.mxu0 0.0
        %674 = vmatpush.msra.mxu0 0.0
        %675 = vmatpush.msra.mxu0 0.0
        %676 = vmatpush.msra.mxu0 0.0
        %677 = vmatpush.msra.mxu0 0.0
        %678 = vmatpush.msra.mxu0 %v300
        %679 = vmatpush.msra.mxu0 %v299
        %680 = vmatmul.f32.gmra.mxu0 %v659
        %v681 = vpop.f32.mrf.mxu0
        %v682 = vadd.f32 0.0, %v681
        %683 = vmatmul.f32.gmra.mxu0 %v662
        %v684 = vpop.f32.mrf.mxu0
        %v685 = vadd.f32 0.0, %v684
        %686 = vdwg.mxu0
        %687 = vmatpush.msra.mxu0 0.0
        %688 = vmatpush.msra.mxu0 0.0
        %689 = vmatpush.msra.mxu0 0.0
        %690 = vmatpush.msra.mxu0 0.0
        %691 = vmatpush.msra.mxu0 0.0
        %692 = vmatpush.msra.mxu0 0.0
        %693 = vmatpush.msra.mxu0 0.0
        %694 = vmatpush.msra.mxu0 0.0
        %695 = vmatpush.msra.mxu0 0.0
        %696 = vmatpush.msra.mxu0 0.0
        %697 = vmatpush.msra.mxu0 0.0
        %698 = vmatpush.msra.mxu0 0.0
        %699 = vmatpush.msra.mxu0 0.0
        %700 = vmatpush.msra.mxu0 0.0
        %701 = vmatpush.msra.mxu0 %v685
        %702 = vmatpush.msra.mxu0 %v682
        %703 = vmatmul.f32.gmra.mxu0 %v336
        %v704 = vpop.f32.mrf.mxu0
        %v705 = vadd.f32 0.0, %v704
        %706 = vmatmul.f32.gmra.mxu0 %v339
        %v707 = vpop.f32.mrf.mxu0
        %v708 = vadd.f32 0.0, %v707
        %709 = vdwg.mxu0
        %v710 = vmul.f32 %v601, %v604
        %v711 = vmul.f32 %v602, %v605
        %v713 = vsel %vm305, %v710, 0
        %v716 = vsel %vm305, %v711, 0
        %718 = vmatpush.msra.mxu0 0.0
        %719 = vmatpush.msra.mxu0 0.0
        %720 = vmatpush.msra.mxu0 0.0
        %721 = vmatpush.msra.mxu0 0.0
        %722 = vmatpush.msra.mxu0 0.0
        %723 = vmatpush.msra.mxu0 0.0
        %724 = vmatpush.msra.mxu0 0.0
        %725 = vmatpush.msra.mxu0 0.0
        %726 = vmatpush.msra.mxu0 0.0
        %727 = vmatpush.msra.mxu0 0.0
        %728 = vmatpush.msra.mxu0 0.0
        %729 = vmatpush.msra.mxu0 0.0
        %730 = vmatpush.msra.mxu0 0.0
        %731 = vmatpush.msra.mxu0 0.0
        %732 = vmatpush.msra.mxu0 %v300
        %733 = vmatpush.msra.mxu0 %v299
        %734 = vmatmul.f32.gmra.mxu0 %v713
        %v735 = vpop.f32.mrf.mxu0
        %v736 = vadd.f32 0.0, %v735
        %737 = vmatmul.f32.gmra.mxu0 %v716
        %v738 = vpop.f32.mrf.mxu0
        %v739 = vadd.f32 0.0, %v738
        %740 = vdwg.mxu0
        %741 = vmatpush.msra.mxu0 0.0
        %742 = vmatpush.msra.mxu0 0.0
        %743 = vmatpush.msra.mxu0 0.0
        %744 = vmatpush.msra.mxu0 0.0
        %745 = vmatpush.msra.mxu0 0.0
        %746 = vmatpush.msra.mxu0 0.0
        %747 = vmatpush.msra.mxu0 0.0
        %748 = vmatpush.msra.mxu0 0.0
        %749 = vmatpush.msra.mxu0 0.0
        %750 = vmatpush.msra.mxu0 0.0
        %751 = vmatpush.msra.mxu0 0.0
        %752 = vmatpush.msra.mxu0 0.0
        %753 = vmatpush.msra.mxu0 0.0
        %754 = vmatpush.msra.mxu0 0.0
        %755 = vmatpush.msra.mxu0 %v739
        %756 = vmatpush.msra.mxu0 %v736
        %757 = vmatmul.f32.gmra.mxu0 %v336
        %v758 = vpop.f32.mrf.mxu0
        %v759 = vadd.f32 0.0, %v758
        %760 = vmatmul.f32.gmra.mxu0 %v339
        %v761 = vpop.f32.mrf.mxu0
        %v762 = vadd.f32 0.0, %v761
        %763 = vdwg.mxu0
        %v764 = vmul.f32 %v601, %v601
        %v765 = vmul.f32 %v602, %v602
        %v766 = vmul.f32 %v604, %v604
        %v767 = vmul.f32 %v605, %v605
        %v768 = vadd.f32 %v764, %v766
        %v769 = vadd.f32 %v765, %v767
        %v771 = vsel %vm305, %v768, 0
        %v774 = vsel %vm305, %v769, 0
        %776 = vmatpush.msra.mxu0 0.0
        %777 = vmatpush.msra.mxu0 0.0
        %778 = vmatpush.msra.mxu0 0.0
        %779 = vmatpush.msra.mxu0 0.0
        %780 = vmatpush.msra.mxu0 0.0
        %781 = vmatpush.msra.mxu0 0.0
        %782 = vmatpush.msra.mxu0 0.0
        %783 = vmatpush.msra.mxu0 0.0
        %784 = vmatpush.msra.mxu0 0.0
        %785 = vmatpush.msra.mxu0 0.0
        %786 = vmatpush.msra.mxu0 0.0
        %787 = vmatpush.msra.mxu0 0.0
        %788 = vmatpush.msra.mxu0 0.0
        %789 = vmatpush.msra.mxu0 0.0
        %790 = vmatpush.msra.mxu0 %v300
        %791 = vmatpush.msra.mxu0 %v299
        %792 = vmatmul.f32.gmra.mxu0 %v771
        %v793 = vpop.f32.mrf.mxu0
        %v794 = vadd.f32 0.0, %v793
        %795 = vmatmul.f32.gmra.mxu0 %v774
        %v796 = vpop.f32.mrf.mxu0
        %v797 = vadd.f32 0.0, %v796
        %798 = vdwg.mxu0
        %799 = vmatpush.msra.mxu0 0.0
        %800 = vmatpush.msra.mxu0 0.0
        %801 = vmatpush.msra.mxu0 0.0
        %802 = vmatpush.msra.mxu0 0.0
        %803 = vmatpush.msra.mxu0 0.0
        %804 = vmatpush.msra.mxu0 0.0
        %805 = vmatpush.msra.mxu0 0.0
        %806 = vmatpush.msra.mxu0 0.0
        %807 = vmatpush.msra.mxu0 0.0
        %808 = vmatpush.msra.mxu0 0.0
        %809 = vmatpush.msra.mxu0 0.0
        %810 = vmatpush.msra.mxu0 0.0
        %811 = vmatpush.msra.mxu0 0.0
        %812 = vmatpush.msra.mxu0 0.0
        %813 = vmatpush.msra.mxu0 %v797
        %814 = vmatpush.msra.mxu0 %v794
        %815 = vmatmul.f32.gmra.mxu0 %v336
        %v816 = vpop.f32.mrf.mxu0
        %v817 = vadd.f32 0.0, %v816
        %818 = vmatmul.f32.gmra.mxu0 %v339
        %v819 = vpop.f32.mrf.mxu0
        %v820 = vadd.f32 0.0, %v819
        %821 = vdwg.mxu0
        %v822 = vmul.f32 %v653, %v705
        %v823 = vmul.f32 %v656, %v708
        %v824 = vmul.f32 %v653, %v653
        %v825 = vmul.f32 %v656, %v656
        %v826 = vmul.f32 %v705, %v705
        %v827 = vmul.f32 %v708, %v708
        %v828 = vadd.f32 %v824, %v826
        %v829 = vadd.f32 %v825, %v827
        %v830 = vmul.f32 %v822, 2.0
        %v831 = vmul.f32 %v823, 2.0
        %v832 = vadd.f32 %v830, 0.0001
        %v833 = vadd.f32 %v831, 0.0001
        %v834 = vsub.f32 %v759, %v822
        %v835 = vsub.f32 %v762, %v823
        %v836 = vmul.f32 %v834, 2.0
        %v837 = vmul.f32 %v835, 2.0
        %v838 = vadd.f32 %v836, 0.0009
        %v839 = vadd.f32 %v837, 0.0009
        %v840 = vmul.f32 %v832, %v838
        %v841 = vmul.f32 %v833, %v839
        %v842 = vadd.f32 %v828, 0.0001
        %v843 = vadd.f32 %v829, 0.0001
        %v844 = vsub.f32 %v817, %v828
        %v845 = vsub.f32 %v820, %v829
        %v846 = vadd.f32 %v844, 0.0009
        %v847 = vadd.f32 %v845, 0.0009
        %v848 = vmul.f32 %v842, %v846
        %v849 = vmul.f32 %v843, %v847
        %v850 = vrcp.pop %v848
        %v851 = vmul.f32 %v848, %v850
        %v852 = vsub.f32 1.0, %v851
        %v853 = vmul.f32 %v850, %v852
        %v854 = vadd.f32 %v850, %v853
        %vm855 = vweird.f32 %v848
        %vm856 = vweird.f32 %v850
        %vm857 = vmor %vm855, %vm856
        %v858 = vsel %vm857, %v850, %v854
        %v859 = vand.u32 2147483647, %v848
        %vm860 = vcmp.eq.f32.partialorder %v859, 8.507059e+37
        %v861 = vand.u32 %v848, 2147483648
        %v862 = vor.u32 1.1754944e-38, %v861
        %v863 = vsel %vm860, %v862, %v858
        %v864 = vrcp.pop %v849
        %v865 = vmul.f32 %v849, %v864
        %v866 = vsub.f32 1.0, %v865
        %v867 = vmul.f32 %v864, %v866
        %v868 = vadd.f32 %v864, %v867
        %vm869 = vweird.f32 %v849
        %vm870 = vweird.f32 %v864
        %vm871 = vmor %vm869, %vm870
        %v872 = vsel %vm871, %v864, %v868
        %v873 = vand.u32 2147483647, %v849
        %vm874 = vcmp.eq.f32.partialorder %v873, 8.507059e+37
        %v875 = vand.u32 %v849, 2147483648
        %v876 = vor.u32 1.1754944e-38, %v875
        %v877 = vsel %vm874, %v876, %v872
        %v878 = vmul.f32 %v840, %v863
        %v879 = vmul.f32 %v841, %v877
        %v880 = vsel %vm305, %v878, 0.0
        %v881 = vsel %vm305, %v879, 0.0
        %v882 = vadd.f32 %v880, %v881
        %883 = vadd.xlane.f32.xlu0 %v882
        %v884 = vpop.xlane.xlu0 %883
        %v885 = vrot.slane %v884, 4
        %v886 = vadd.f32 %v884, %v885
        %v887 = vrot.slane %v886, 2
        %v888 = vadd.f32 %v886, %v887
        %v889 = vrot.slane %v888, 1
        %v890 = vadd.f32 %v888, %v889
        %s891 = vtos %v890
        %v892 = vstv %s891
        %893 = vst [vmem:[%s294 + $0x1] sm:$0x1] %v892
        %s894 = scalar_lea.vmem %s244, 32 [#allocation2]
        %v895 = vld [vmem:[%s894] sm:$0xff]
        %v896 = vld [vmem:[%s894 + $0x8] sm:$0xff]
        %s897 = scalar_lea.vmem %s254, 32 [#allocation5]
        %v898 = vld [vmem:[%s897] sm:$0xff]
        %v899 = vld [vmem:[%s897 + $0x8] sm:$0xff]
        %v901 = vsel %vm305, %v895, 0
        %v904 = vsel %vm305, %v896, 0
        %906 = vmatpush.msra.mxu0 0.0
        %907 = vmatpush.msra.mxu0 0.0
        %908 = vmatpush.msra.mxu0 0.0
        %909 = vmatpush.msra.mxu0 0.0
        %910 = vmatpush.msra.mxu0 0.0
        %911 = vmatpush.msra.mxu0 0.0
        %912 = vmatpush.msra.mxu0 0.0
        %913 = vmatpush.msra.mxu0 0.0
        %914 = vmatpush.msra.mxu0 0.0
        %915 = vmatpush.msra.mxu0 0.0
        %916 = vmatpush.msra.mxu0 0.0
        %917 = vmatpush.msra.mxu0 0.0
        %918 = vmatpush.msra.mxu0 0.0
        %919 = vmatpush.msra.mxu0 0.0
        %920 = vmatpush.msra.mxu0 %v300
        %921 = vmatpush.msra.mxu0 %v299
        %922 = vmatmul.f32.gmra.mxu0 %v901
        %v923 = vpop.f32.mrf.mxu0
        %v924 = vadd.f32 0.0, %v923
        %925 = vmatmul.f32.gmra.mxu0 %v904
        %v926 = vpop.f32.mrf.mxu0
        %v927 = vadd.f32 0.0, %v926
        %928 = vdwg.mxu0
        %929 = vmatpush.msra.mxu0 0.0
        %930 = vmatpush.msra.mxu0 0.0
        %931 = vmatpush.msra.mxu0 0.0
        %932 = vmatpush.msra.mxu0 0.0
        %933 = vmatpush.msra.mxu0 0.0
        %934 = vmatpush.msra.mxu0 0.0
        %935 = vmatpush.msra.mxu0 0.0
        %936 = vmatpush.msra.mxu0 0.0
        %937 = vmatpush.msra.mxu0 0.0
        %938 = vmatpush.msra.mxu0 0.0
        %939 = vmatpush.msra.mxu0 0.0
        %940 = vmatpush.msra.mxu0 0.0
        %941 = vmatpush.msra.mxu0 0.0
        %942 = vmatpush.msra.mxu0 0.0
        %943 = vmatpush.msra.mxu0 %v927
        %944 = vmatpush.msra.mxu0 %v924
        %945 = vmatmul.f32.gmra.mxu0 %v336
        %v946 = vpop.f32.mrf.mxu0
        %v947 = vadd.f32 0.0, %v946
        %948 = vmatmul.f32.gmra.mxu0 %v339
        %v949 = vpop.f32.mrf.mxu0
        %v950 = vadd.f32 0.0, %v949
        %951 = vdwg.mxu0
        %v953 = vsel %vm305, %v898, 0
        %v956 = vsel %vm305, %v899, 0
        %958 = vmatpush.msra.mxu0 0.0
        %959 = vmatpush.msra.mxu0 0.0
        %960 = vmatpush.msra.mxu0 0.0
        %961 = vmatpush.msra.mxu0 0.0
        %962 = vmatpush.msra.mxu0 0.0
        %963 = vmatpush.msra.mxu0 0.0
        %964 = vmatpush.msra.mxu0 0.0
        %965 = vmatpush.msra.mxu0 0.0
        %966 = vmatpush.msra.mxu0 0.0
        %967 = vmatpush.msra.mxu0 0.0
        %968 = vmatpush.msra.mxu0 0.0
        %969 = vmatpush.msra.mxu0 0.0
        %970 = vmatpush.msra.mxu0 0.0
        %971 = vmatpush.msra.mxu0 0.0
        %972 = vmatpush.msra.mxu0 %v300
        %973 = vmatpush.msra.mxu0 %v299
        %974 = vmatmul.f32.gmra.mxu0 %v953
        %v975 = vpop.f32.mrf.mxu0
        %v976 = vadd.f32 0.0, %v975
        %977 = vmatmul.f32.gmra.mxu0 %v956
        %v978 = vpop.f32.mrf.mxu0
        %v979 = vadd.f32 0.0, %v978
        %980 = vdwg.mxu0
        %981 = vmatpush.msra.mxu0 0.0
        %982 = vmatpush.msra.mxu0 0.0
        %983 = vmatpush.msra.mxu0 0.0
        %984 = vmatpush.msra.mxu0 0.0
        %985 = vmatpush.msra.mxu0 0.0
        %986 = vmatpush.msra.mxu0 0.0
        %987 = vmatpush.msra.mxu0 0.0
        %988 = vmatpush.msra.mxu0 0.0
        %989 = vmatpush.msra.mxu0 0.0
        %990 = vmatpush.msra.mxu0 0.0
        %991 = vmatpush.msra.mxu0 0.0
        %992 = vmatpush.msra.mxu0 0.0
        %993 = vmatpush.msra.mxu0 0.0
        %994 = vmatpush.msra.mxu0 0.0
        %995 = vmatpush.msra.mxu0 %v979
        %996 = vmatpush.msra.mxu0 %v976
        %997 = vmatmul.f32.gmra.mxu0 %v336
        %v998 = vpop.f32.mrf.mxu0
        %v999 = vadd.f32 0.0, %v998
        %1000 = vmatmul.f32.gmra.mxu0 %v339
        %v1001 = vpop.f32.mrf.mxu0
        %v1002 = vadd.f32 0.0, %v1001
        %1003 = vdwg.mxu0
        %v1004 = vmul.f32 %v895, %v898
        %v1005 = vmul.f32 %v896, %v899
        %v1007 = vsel %vm305, %v1004, 0
        %v1010 = vsel %vm305, %v1005, 0
        %1012 = vmatpush.msra.mxu0 0.0
        %1013 = vmatpush.msra.mxu0 0.0
        %1014 = vmatpush.msra.mxu0 0.0
        %1015 = vmatpush.msra.mxu0 0.0
        %1016 = vmatpush.msra.mxu0 0.0
        %1017 = vmatpush.msra.mxu0 0.0
        %1018 = vmatpush.msra.mxu0 0.0
        %1019 = vmatpush.msra.mxu0 0.0
        %1020 = vmatpush.msra.mxu0 0.0
        %1021 = vmatpush.msra.mxu0 0.0
        %1022 = vmatpush.msra.mxu0 0.0
        %1023 = vmatpush.msra.mxu0 0.0
        %1024 = vmatpush.msra.mxu0 0.0
        %1025 = vmatpush.msra.mxu0 0.0
        %1026 = vmatpush.msra.mxu0 %v300
        %1027 = vmatpush.msra.mxu0 %v299
        %1028 = vmatmul.f32.gmra.mxu0 %v1007
        %v1029 = vpop.f32.mrf.mxu0
        %v1030 = vadd.f32 0.0, %v1029
        %1031 = vmatmul.f32.gmra.mxu0 %v1010
        %v1032 = vpop.f32.mrf.mxu0
        %v1033 = vadd.f32 0.0, %v1032
        %1034 = vdwg.mxu0
        %1035 = vmatpush.msra.mxu0 0.0
        %1036 = vmatpush.msra.mxu0 0.0
        %1037 = vmatpush.msra.mxu0 0.0
        %1038 = vmatpush.msra.mxu0 0.0
        %1039 = vmatpush.msra.mxu0 0.0
        %1040 = vmatpush.msra.mxu0 0.0
        %1041 = vmatpush.msra.mxu0 0.0
        %1042 = vmatpush.msra.mxu0 0.0
        %1043 = vmatpush.msra.mxu0 0.0
        %1044 = vmatpush.msra.mxu0 0.0
        %1045 = vmatpush.msra.mxu0 0.0
        %1046 = vmatpush.msra.mxu0 0.0
        %1047 = vmatpush.msra.mxu0 0.0
        %1048 = vmatpush.msra.mxu0 0.0
        %1049 = vmatpush.msra.mxu0 %v1033
        %1050 = vmatpush.msra.mxu0 %v1030
        %1051 = vmatmul.f32.gmra.mxu0 %v336
        %v1052 = vpop.f32.mrf.mxu0
        %v1053 = vadd.f32 0.0, %v1052
        %1054 = vmatmul.f32.gmra.mxu0 %v339
        %v1055 = vpop.f32.mrf.mxu0
        %v1056 = vadd.f32 0.0, %v1055
        %1057 = vdwg.mxu0
        %v1058 = vmul.f32 %v895, %v895
        %v1059 = vmul.f32 %v896, %v896
        %v1060 = vmul.f32 %v898, %v898
        %v1061 = vmul.f32 %v899, %v899
        %v1062 = vadd.f32 %v1058, %v1060
        %v1063 = vadd.f32 %v1059, %v1061
        %v1065 = vsel %vm305, %v1062, 0
        %v1068 = vsel %vm305, %v1063, 0
        %1070 = vmatpush.msra.mxu0 0.0
        %1071 = vmatpush.msra.mxu0 0.0
        %1072 = vmatpush.msra.mxu0 0.0
        %1073 = vmatpush.msra.mxu0 0.0
        %1074 = vmatpush.msra.mxu0 0.0
        %1075 = vmatpush.msra.mxu0 0.0
        %1076 = vmatpush.msra.mxu0 0.0
        %1077 = vmatpush.msra.mxu0 0.0
        %1078 = vmatpush.msra.mxu0 0.0
        %1079 = vmatpush.msra.mxu0 0.0
        %1080 = vmatpush.msra.mxu0 0.0
        %1081 = vmatpush.msra.mxu0 0.0
        %1082 = vmatpush.msra.mxu0 0.0
        %1083 = vmatpush.msra.mxu0 0.0
        %1084 = vmatpush.msra.mxu0 %v300
        %1085 = vmatpush.msra.mxu0 %v299
        %1086 = vmatmul.f32.gmra.mxu0 %v1065
        %v1087 = vpop.f32.mrf.mxu0
        %v1088 = vadd.f32 0.0, %v1087
        %1089 = vmatmul.f32.gmra.mxu0 %v1068
        %v1090 = vpop.f32.mrf.mxu0
        %v1091 = vadd.f32 0.0, %v1090
        %1092 = vdwg.mxu0
        %1093 = vmatpush.msra.mxu0 0.0
        %1094 = vmatpush.msra.mxu0 0.0
        %1095 = vmatpush.msra.mxu0 0.0
        %1096 = vmatpush.msra.mxu0 0.0
        %1097 = vmatpush.msra.mxu0 0.0
        %1098 = vmatpush.msra.mxu0 0.0
        %1099 = vmatpush.msra.mxu0 0.0
        %1100 = vmatpush.msra.mxu0 0.0
        %1101 = vmatpush.msra.mxu0 0.0
        %1102 = vmatpush.msra.mxu0 0.0
        %1103 = vmatpush.msra.mxu0 0.0
        %1104 = vmatpush.msra.mxu0 0.0
        %1105 = vmatpush.msra.mxu0 0.0
        %1106 = vmatpush.msra.mxu0 0.0
        %1107 = vmatpush.msra.mxu0 %v1091
        %1108 = vmatpush.msra.mxu0 %v1088
        %1109 = vmatmul.f32.gmra.mxu0 %v336
        %v1110 = vpop.f32.mrf.mxu0
        %v1111 = vadd.f32 0.0, %v1110
        %1112 = vmatmul.f32.gmra.mxu0 %v339
        %v1113 = vpop.f32.mrf.mxu0
        %v1114 = vadd.f32 0.0, %v1113
        %1115 = vdwg.mxu0
        %v1116 = vmul.f32 %v947, %v999
        %v1117 = vmul.f32 %v950, %v1002
        %v1118 = vmul.f32 %v947, %v947
        %v1119 = vmul.f32 %v950, %v950
        %v1120 = vmul.f32 %v999, %v999
        %v1121 = vmul.f32 %v1002, %v1002
        %v1122 = vadd.f32 %v1118, %v1120
        %v1123 = vadd.f32 %v1119, %v1121
        %v1124 = vmul.f32 %v1116, 2.0
        %v1125 = vmul.f32 %v1117, 2.0
        %v1126 = vadd.f32 %v1124, 0.0001
        %v1127 = vadd.f32 %v1125, 0.0001
        %v1128 = vsub.f32 %v1053, %v1116
        %v1129 = vsub.f32 %v1056, %v1117
        %v1130 = vmul.f32 %v1128, 2.0
        %v1131 = vmul.f32 %v1129, 2.0
        %v1132 = vadd.f32 %v1130, 0.0009
        %v1133 = vadd.f32 %v1131, 0.0009
        %v1134 = vmul.f32 %v1126, %v1132
        %v1135 = vmul.f32 %v1127, %v1133
        %v1136 = vadd.f32 %v1122, 0.0001
        %v1137 = vadd.f32 %v1123, 0.0001
        %v1138 = vsub.f32 %v1111, %v1122
        %v1139 = vsub.f32 %v1114, %v1123
        %v1140 = vadd.f32 %v1138, 0.0009
        %v1141 = vadd.f32 %v1139, 0.0009
        %v1142 = vmul.f32 %v1136, %v1140
        %v1143 = vmul.f32 %v1137, %v1141
        %v1144 = vrcp.pop %v1142
        %v1145 = vmul.f32 %v1142, %v1144
        %v1146 = vsub.f32 1.0, %v1145
        %v1147 = vmul.f32 %v1144, %v1146
        %v1148 = vadd.f32 %v1144, %v1147
        %vm1149 = vweird.f32 %v1142
        %vm1150 = vweird.f32 %v1144
        %vm1151 = vmor %vm1149, %vm1150
        %v1152 = vsel %vm1151, %v1144, %v1148
        %v1153 = vand.u32 2147483647, %v1142
        %vm1154 = vcmp.eq.f32.partialorder %v1153, 8.507059e+37
        %v1155 = vand.u32 %v1142, 2147483648
        %v1156 = vor.u32 1.1754944e-38, %v1155
        %v1157 = vsel %vm1154, %v1156, %v1152
        %v1158 = vrcp.pop %v1143
        %v1159 = vmul.f32 %v1143, %v1158
        %v1160 = vsub.f32 1.0, %v1159
        %v1161 = vmul.f32 %v1158, %v1160
        %v1162 = vadd.f32 %v1158, %v1161
        %vm1163 = vweird.f32 %v1143
        %vm1164 = vweird.f32 %v1158
        %vm1165 = vmor %vm1163, %vm1164
        %v1166 = vsel %vm1165, %v1158, %v1162
        %v1167 = vand.u32 2147483647, %v1143
        %vm1168 = vcmp.eq.f32.partialorder %v1167, 8.507059e+37
        %v1169 = vand.u32 %v1143, 2147483648
        %v1170 = vor.u32 1.1754944e-38, %v1169
        %v1171 = vsel %vm1168, %v1170, %v1166
        %v1172 = vmul.f32 %v1134, %v1157
        %v1173 = vmul.f32 %v1135, %v1171
        %v1174 = vsel %vm305, %v1172, 0.0
        %v1175 = vsel %vm305, %v1173, 0.0
        %v1176 = vadd.f32 %v1174, %v1175
        %1177 = vadd.xlane.f32.xlu0 %v1176
        %v1178 = vpop.xlane.xlu0 %1177
        %v1179 = vrot.slane %v1178, 4
        %v1180 = vadd.f32 %v1178, %v1179
        %v1181 = vrot.slane %v1180, 2
        %v1182 = vadd.f32 %v1180, %v1181
        %v1183 = vrot.slane %v1182, 1
        %v1184 = vadd.f32 %v1182, %v1183
        %s1185 = vtos %v1184
        %v1186 = vstv %s1185
        %1187 = vst [vmem:[%s294 + $0x2] sm:$0x1] %v1186
        %s1188 = scalar_lea.vmem %s244, 48 [#allocation2]
        %v1189 = vld [vmem:[%s1188] sm:$0xff]
        %v1190 = vld [vmem:[%s1188 + $0x8] sm:$0xff]
        %s1191 = scalar_lea.vmem %s254, 48 [#allocation5]
        %v1192 = vld [vmem:[%s1191] sm:$0xff]
        %v1193 = vld [vmem:[%s1191 + $0x8] sm:$0xff]
        %v1195 = vsel %vm305, %v1189, 0
        %v1198 = vsel %vm305, %v1190, 0
        %1200 = vmatpush.msra.mxu0 0.0
        %1201 = vmatpush.msra.mxu0 0.0
        %1202 = vmatpush.msra.mxu0 0.0
        %1203 = vmatpush.msra.mxu0 0.0
        %1204 = vmatpush.msra.mxu0 0.0
        %1205 = vmatpush.msra.mxu0 0.0
        %1206 = vmatpush.msra.mxu0 0.0
        %1207 = vmatpush.msra.mxu0 0.0
        %1208 = vmatpush.msra.mxu0 0.0
        %1209 = vmatpush.msra.mxu0 0.0
        %1210 = vmatpush.msra.mxu0 0.0
        %1211 = vmatpush.msra.mxu0 0.0
        %1212 = vmatpush.msra.mxu0 0.0
        %1213 = vmatpush.msra.mxu0 0.0
        %1214 = vmatpush.msra.mxu0 %v300
        %1215 = vmatpush.msra.mxu0 %v299
        %1216 = vmatmul.f32.gmra.mxu0 %v1195
        %v1217 = vpop.f32.mrf.mxu0
        %v1218 = vadd.f32 0.0, %v1217
        %1219 = vmatmul.f32.gmra.mxu0 %v1198
        %v1220 = vpop.f32.mrf.mxu0
        %v1221 = vadd.f32 0.0, %v1220
        %1222 = vdwg.mxu0
        %1223 = vmatpush.msra.mxu0 0.0
        %1224 = vmatpush.msra.mxu0 0.0
        %1225 = vmatpush.msra.mxu0 0.0
        %1226 = vmatpush.msra.mxu0 0.0
        %1227 = vmatpush.msra.mxu0 0.0
        %1228 = vmatpush.msra.mxu0 0.0
        %1229 = vmatpush.msra.mxu0 0.0
        %1230 = vmatpush.msra.mxu0 0.0
        %1231 = vmatpush.msra.mxu0 0.0
        %1232 = vmatpush.msra.mxu0 0.0
        %1233 = vmatpush.msra.mxu0 0.0
        %1234 = vmatpush.msra.mxu0 0.0
        %1235 = vmatpush.msra.mxu0 0.0
        %1236 = vmatpush.msra.mxu0 0.0
        %1237 = vmatpush.msra.mxu0 %v1221
        %1238 = vmatpush.msra.mxu0 %v1218
        %1239 = vmatmul.f32.gmra.mxu0 %v336
        %v1240 = vpop.f32.mrf.mxu0
        %v1241 = vadd.f32 0.0, %v1240
        %1242 = vmatmul.f32.gmra.mxu0 %v339
        %v1243 = vpop.f32.mrf.mxu0
        %v1244 = vadd.f32 0.0, %v1243
        %1245 = vdwg.mxu0
        %v1247 = vsel %vm305, %v1192, 0
        %v1250 = vsel %vm305, %v1193, 0
        %1252 = vmatpush.msra.mxu0 0.0
        %1253 = vmatpush.msra.mxu0 0.0
        %1254 = vmatpush.msra.mxu0 0.0
        %1255 = vmatpush.msra.mxu0 0.0
        %1256 = vmatpush.msra.mxu0 0.0
        %1257 = vmatpush.msra.mxu0 0.0
        %1258 = vmatpush.msra.mxu0 0.0
        %1259 = vmatpush.msra.mxu0 0.0
        %1260 = vmatpush.msra.mxu0 0.0
        %1261 = vmatpush.msra.mxu0 0.0
        %1262 = vmatpush.msra.mxu0 0.0
        %1263 = vmatpush.msra.mxu0 0.0
        %1264 = vmatpush.msra.mxu0 0.0
        %1265 = vmatpush.msra.mxu0 0.0
        %1266 = vmatpush.msra.mxu0 %v300
        %1267 = vmatpush.msra.mxu0 %v299
        %1268 = vmatmul.f32.gmra.mxu0 %v1247
        %v1269 = vpop.f32.mrf.mxu0
        %v1270 = vadd.f32 0.0, %v1269
        %1271 = vmatmul.f32.gmra.mxu0 %v1250
        %v1272 = vpop.f32.mrf.mxu0
        %v1273 = vadd.f32 0.0, %v1272
        %1274 = vdwg.mxu0
        %1275 = vmatpush.msra.mxu0 0.0
        %1276 = vmatpush.msra.mxu0 0.0
        %1277 = vmatpush.msra.mxu0 0.0
        %1278 = vmatpush.msra.mxu0 0.0
        %1279 = vmatpush.msra.mxu0 0.0
        %1280 = vmatpush.msra.mxu0 0.0
        %1281 = vmatpush.msra.mxu0 0.0
        %1282 = vmatpush.msra.mxu0 0.0
        %1283 = vmatpush.msra.mxu0 0.0
        %1284 = vmatpush.msra.mxu0 0.0
        %1285 = vmatpush.msra.mxu0 0.0
        %1286 = vmatpush.msra.mxu0 0.0
        %1287 = vmatpush.msra.mxu0 0.0
        %1288 = vmatpush.msra.mxu0 0.0
        %1289 = vmatpush.msra.mxu0 %v1273
        %1290 = vmatpush.msra.mxu0 %v1270
        %1291 = vmatmul.f32.gmra.mxu0 %v336
        %v1292 = vpop.f32.mrf.mxu0
        %v1293 = vadd.f32 0.0, %v1292
        %1294 = vmatmul.f32.gmra.mxu0 %v339
        %v1295 = vpop.f32.mrf.mxu0
        %v1296 = vadd.f32 0.0, %v1295
        %1297 = vdwg.mxu0
        %v1298 = vmul.f32 %v1189, %v1192
        %v1299 = vmul.f32 %v1190, %v1193
        %v1301 = vsel %vm305, %v1298, 0
        %v1304 = vsel %vm305, %v1299, 0
        %1306 = vmatpush.msra.mxu0 0.0
        %1307 = vmatpush.msra.mxu0 0.0
        %1308 = vmatpush.msra.mxu0 0.0
        %1309 = vmatpush.msra.mxu0 0.0
        %1310 = vmatpush.msra.mxu0 0.0
        %1311 = vmatpush.msra.mxu0 0.0
        %1312 = vmatpush.msra.mxu0 0.0
        %1313 = vmatpush.msra.mxu0 0.0
        %1314 = vmatpush.msra.mxu0 0.0
        %1315 = vmatpush.msra.mxu0 0.0
        %1316 = vmatpush.msra.mxu0 0.0
        %1317 = vmatpush.msra.mxu0 0.0
        %1318 = vmatpush.msra.mxu0 0.0
        %1319 = vmatpush.msra.mxu0 0.0
        %1320 = vmatpush.msra.mxu0 %v300
        %1321 = vmatpush.msra.mxu0 %v299
        %1322 = vmatmul.f32.gmra.mxu0 %v1301
        %v1323 = vpop.f32.mrf.mxu0
        %v1324 = vadd.f32 0.0, %v1323
        %1325 = vmatmul.f32.gmra.mxu0 %v1304
        %v1326 = vpop.f32.mrf.mxu0
        %v1327 = vadd.f32 0.0, %v1326
        %1328 = vdwg.mxu0
        %1329 = vmatpush.msra.mxu0 0.0
        %1330 = vmatpush.msra.mxu0 0.0
        %1331 = vmatpush.msra.mxu0 0.0
        %1332 = vmatpush.msra.mxu0 0.0
        %1333 = vmatpush.msra.mxu0 0.0
        %1334 = vmatpush.msra.mxu0 0.0
        %1335 = vmatpush.msra.mxu0 0.0
        %1336 = vmatpush.msra.mxu0 0.0
        %1337 = vmatpush.msra.mxu0 0.0
        %1338 = vmatpush.msra.mxu0 0.0
        %1339 = vmatpush.msra.mxu0 0.0
        %1340 = vmatpush.msra.mxu0 0.0
        %1341 = vmatpush.msra.mxu0 0.0
        %1342 = vmatpush.msra.mxu0 0.0
        %1343 = vmatpush.msra.mxu0 %v1327
        %1344 = vmatpush.msra.mxu0 %v1324
        %1345 = vmatmul.f32.gmra.mxu0 %v336
        %v1346 = vpop.f32.mrf.mxu0
        %v1347 = vadd.f32 0.0, %v1346
        %1348 = vmatmul.f32.gmra.mxu0 %v339
        %v1349 = vpop.f32.mrf.mxu0
        %v1350 = vadd.f32 0.0, %v1349
        %1351 = vdwg.mxu0
        %v1352 = vmul.f32 %v1189, %v1189
        %v1353 = vmul.f32 %v1190, %v1190
        %v1354 = vmul.f32 %v1192, %v1192
        %v1355 = vmul.f32 %v1193, %v1193
        %v1356 = vadd.f32 %v1352, %v1354
        %v1357 = vadd.f32 %v1353, %v1355
        %v1359 = vsel %vm305, %v1356, 0
        %v1362 = vsel %vm305, %v1357, 0
        %1364 = vmatpush.msra.mxu0 0.0
        %1365 = vmatpush.msra.mxu0 0.0
        %1366 = vmatpush.msra.mxu0 0.0
        %1367 = vmatpush.msra.mxu0 0.0
        %1368 = vmatpush.msra.mxu0 0.0
        %1369 = vmatpush.msra.mxu0 0.0
        %1370 = vmatpush.msra.mxu0 0.0
        %1371 = vmatpush.msra.mxu0 0.0
        %1372 = vmatpush.msra.mxu0 0.0
        %1373 = vmatpush.msra.mxu0 0.0
        %1374 = vmatpush.msra.mxu0 0.0
        %1375 = vmatpush.msra.mxu0 0.0
        %1376 = vmatpush.msra.mxu0 0.0
        %1377 = vmatpush.msra.mxu0 0.0
        %1378 = vmatpush.msra.mxu0 %v300
        %1379 = vmatpush.msra.mxu0 %v299
        %1380 = vmatmul.f32.gmra.mxu0 %v1359
        %v1381 = vpop.f32.mrf.mxu0
        %v1382 = vadd.f32 0.0, %v1381
        %1383 = vmatmul.f32.gmra.mxu0 %v1362
        %v1384 = vpop.f32.mrf.mxu0
        %v1385 = vadd.f32 0.0, %v1384
        %1386 = vdwg.mxu0
        %1387 = vmatpush.msra.mxu0 0.0
        %1388 = vmatpush.msra.mxu0 0.0
        %1389 = vmatpush.msra.mxu0 0.0
        %1390 = vmatpush.msra.mxu0 0.0
        %1391 = vmatpush.msra.mxu0 0.0
        %1392 = vmatpush.msra.mxu0 0.0
        %1393 = vmatpush.msra.mxu0 0.0
        %1394 = vmatpush.msra.mxu0 0.0
        %1395 = vmatpush.msra.mxu0 0.0
        %1396 = vmatpush.msra.mxu0 0.0
        %1397 = vmatpush.msra.mxu0 0.0
        %1398 = vmatpush.msra.mxu0 0.0
        %1399 = vmatpush.msra.mxu0 0.0
        %1400 = vmatpush.msra.mxu0 0.0
        %1401 = vmatpush.msra.mxu0 %v1385
        %1402 = vmatpush.msra.mxu0 %v1382
        %1403 = vmatmul.f32.gmra.mxu0 %v336
        %v1404 = vpop.f32.mrf.mxu0
        %v1405 = vadd.f32 0.0, %v1404
        %1406 = vmatmul.f32.gmra.mxu0 %v339
        %v1407 = vpop.f32.mrf.mxu0
        %v1408 = vadd.f32 0.0, %v1407
        %1409 = vdwg.mxu0
        %v1410 = vmul.f32 %v1241, %v1293
        %v1411 = vmul.f32 %v1244, %v1296
        %v1412 = vmul.f32 %v1241, %v1241
        %v1413 = vmul.f32 %v1244, %v1244
        %v1414 = vmul.f32 %v1293, %v1293
        %v1415 = vmul.f32 %v1296, %v1296
        %v1416 = vadd.f32 %v1412, %v1414
        %v1417 = vadd.f32 %v1413, %v1415
        %v1418 = vmul.f32 %v1410, 2.0
        %v1419 = vmul.f32 %v1411, 2.0
        %v1420 = vadd.f32 %v1418, 0.0001
        %v1421 = vadd.f32 %v1419, 0.0001
        %v1422 = vsub.f32 %v1347, %v1410
        %v1423 = vsub.f32 %v1350, %v1411
        %v1424 = vmul.f32 %v1422, 2.0
        %v1425 = vmul.f32 %v1423, 2.0
        %v1426 = vadd.f32 %v1424, 0.0009
        %v1427 = vadd.f32 %v1425, 0.0009
        %v1428 = vmul.f32 %v1420, %v1426
        %v1429 = vmul.f32 %v1421, %v1427
        %v1430 = vadd.f32 %v1416, 0.0001
        %v1431 = vadd.f32 %v1417, 0.0001
        %v1432 = vsub.f32 %v1405, %v1416
        %v1433 = vsub.f32 %v1408, %v1417
        %v1434 = vadd.f32 %v1432, 0.0009
        %v1435 = vadd.f32 %v1433, 0.0009
        %v1436 = vmul.f32 %v1430, %v1434
        %v1437 = vmul.f32 %v1431, %v1435
        %v1438 = vrcp.pop %v1436
        %v1439 = vmul.f32 %v1436, %v1438
        %v1440 = vsub.f32 1.0, %v1439
        %v1441 = vmul.f32 %v1438, %v1440
        %v1442 = vadd.f32 %v1438, %v1441
        %vm1443 = vweird.f32 %v1436
        %vm1444 = vweird.f32 %v1438
        %vm1445 = vmor %vm1443, %vm1444
        %v1446 = vsel %vm1445, %v1438, %v1442
        %v1447 = vand.u32 2147483647, %v1436
        %vm1448 = vcmp.eq.f32.partialorder %v1447, 8.507059e+37
        %v1449 = vand.u32 %v1436, 2147483648
        %v1450 = vor.u32 1.1754944e-38, %v1449
        %v1451 = vsel %vm1448, %v1450, %v1446
        %v1452 = vrcp.pop %v1437
        %v1453 = vmul.f32 %v1437, %v1452
        %v1454 = vsub.f32 1.0, %v1453
        %v1455 = vmul.f32 %v1452, %v1454
        %v1456 = vadd.f32 %v1452, %v1455
        %vm1457 = vweird.f32 %v1437
        %vm1458 = vweird.f32 %v1452
        %vm1459 = vmor %vm1457, %vm1458
        %v1460 = vsel %vm1459, %v1452, %v1456
        %v1461 = vand.u32 2147483647, %v1437
        %vm1462 = vcmp.eq.f32.partialorder %v1461, 8.507059e+37
        %v1463 = vand.u32 %v1437, 2147483648
        %v1464 = vor.u32 1.1754944e-38, %v1463
        %v1465 = vsel %vm1462, %v1464, %v1460
        %v1466 = vmul.f32 %v1428, %v1451
        %v1467 = vmul.f32 %v1429, %v1465
        %v1468 = vsel %vm305, %v1466, 0.0
        %v1469 = vsel %vm305, %v1467, 0.0
        %v1470 = vadd.f32 %v1468, %v1469
        %1471 = vadd.xlane.f32.xlu0 %v1470
        %v1472 = vpop.xlane.xlu0 %1471
        %v1473 = vrot.slane %v1472, 4
        %v1474 = vadd.f32 %v1472, %v1473
        %v1475 = vrot.slane %v1474, 2
        %v1476 = vadd.f32 %v1474, %v1475
        %v1477 = vrot.slane %v1476, 1
        %v1478 = vadd.f32 %v1476, %v1477
        %s1479 = vtos %v1478
        %v1480 = vstv %s1479
        %1481 = vst [vmem:[%s294 + $0x3] sm:$0x1] %v1480
        %s1482 = sand.u32 %s127, 1
        %s1483 = scalar_lea.sflag [#allocation4], %s1482
        %s1484 = sand.u32 %s127, 1
        %s1485 = smul.addr %s1484, 4
        %s1486 = scalar_lea.vmem [#allocation10], %s1485
        // Predicated region
        $region53: #{tpu_custom_call.1} parent=35 // pred_check
          %p1487 = pneg %p137
        $region54: #{tpu_custom_call.1} parent=35 // pred_check_branch
          %1489 = sbr.rel (%p1487) target = $region56
        $region55: #{tpu_custom_call.1} parent=35 // pred_region
          %1491 = vsyncadd %s1483, 0
          %s1492 = smul.addr %s25, 4
          %s1493 = scalar_lea.hbm %s4, %s1492
          %s1495 = sshll.u32 %s1486, 4
          %s1496 = int_to_ptr.vmem [resolvable:$true] %s1495
          %s1497 = sshll.u32 %s1493, 4
          %s1498 = int_to_ptr.hbm [resolvable:$true] %s1497
          %1500 = dma.vmem_to_hbm [thread:$0]  %s1496, 64, %s1498, %s1483
        $region56: #{tpu_custom_call.1} parent=35 // pred_fallthru
          _
      $region36: #{tpu_custom_call.1} parent=5 // pred_fallthru
        _
      %p1501 = scmp.le.s32.totalorder 2, %s20
      // Predicated region
      $region57: #{tpu_custom_call.1} parent=5 // pred_check
        %p1502 = pneg %p1501
      $region58: #{tpu_custom_call.1} parent=5 // pred_check_branch
        %1504 = sbr.rel (%p1502) target = $region60
      $region59: #{tpu_custom_call.1} parent=5 // pred_region
        %s1505 = ssub.s32 %s20, 2
        // Predicated region
        $region61: #{tpu_custom_call.1} parent=59 // pred_check
          %p1506 = pneg %p143
        $region62: #{tpu_custom_call.1} parent=59 // pred_check_branch
          %1508 = sbr.rel (%p1506) target = $region64
        $region63: #{tpu_custom_call.1} parent=59 // pred_region
          %s1509 = sand.u32 %s128, 1
          %s1510 = scalar_lea.sflag [#allocation4], %s1509
          %s1511 = sand.u32 %s128, 1
          %s1512 = smul.addr %s1511, 4
          %s1513 = scalar_lea.vmem [#allocation10], %s1512
          %1515 = dma.done %s1510, 64
        $region64: #{tpu_custom_call.1} parent=59 // pred_fallthru
          _
      $region60: #{tpu_custom_call.1} parent=5 // pred_fallthru
        _
    $region6: #{tpu_custom_call.1} parent=1 // loop_footer
      %s24 = sadd.s32 1, %s20
    $region7: #{tpu_custom_call.1} parent=1 // loop_footer_branch
      %19 = sbr.rel target = $region3
    $region8: #{tpu_custom_call.1} parent=1 // loop_exit
      _
    %1516 = vsyncpa [#allocation3], 1
    %s1517 = scalar_lea.sflag [#allocation3], 1
    %1518 = vsyncpa %s1517, 1
    %1519 = vsyncpa [#allocation6], 1
    %s1520 = scalar_lea.sflag [#allocation6], 1
    %1521 = vsyncpa %s1520, 1
    %1522 = vsyncpa [#allocation9], 1
    %1523 = vsyncpa [#allocation4], 1
    %s1524 = scalar_lea.sflag [#allocation4], 1
    %1525 = vsyncpa %s1524, 1

</llo_original>
